<compile_context>
chip_gen: v7x
topology: tpu7x:2x2x1
jax: 0.10.0
libtpu: 0.0.40
codegen_flags: <defaults>
</compile_context>

<pallas_src>
import jax
import jax.numpy as jnp
from jax.experimental import pallas as pl
from jax.experimental.pallas import tpu as pltpu


def _round_up(n, m):
    return ((n + m - 1) // m) * m


def session_ae_kernel(x_ref,                 # (tile_b, 7)  f32 batch-major input block
                      w1_ref, b1_ref,        # (7, 16) bf16, (1, 16) f32
                      w23_ref, b23_ref,      # (16, 16) bf16, (1, 16) f32  folded 16->4->16
                      w4_ref, b4_ref,        # (16, 7) bf16, (1, 7) f32
                      o_ref):                # (tile_b, 7)  f32 output block
    x = x_ref[...].astype(jnp.bfloat16)

    # encoder Linear(7->16) -> ReLU   (single bf16 MXU pass, f32 accumulate)
    h1 = jnp.dot(x, w1_ref[...], preferred_element_type=jnp.float32) + b1_ref[...]
    h1 = jnp.maximum(h1, 0.0).astype(jnp.bfloat16)

    # folded Linear(16->4) o Linear(4->16), then decoder ReLU
    h2 = jnp.dot(h1, w23_ref[...], preferred_element_type=jnp.float32) + b23_ref[...]
    h2 = jnp.maximum(h2, 0.0).astype(jnp.bfloat16)

    # decoder Linear(16->7)
    out = jnp.dot(h2, w4_ref[...], preferred_element_type=jnp.float32) + b4_ref[...]
    o_ref[...] = out.astype(o_ref.dtype)


def _prepare_params(params):
    """Exact f32 fold of the rank-4 bottleneck + layout/dtype prep for x @ W."""
    hi = jax.lax.Precision.HIGHEST
    f32, bf16 = jnp.float32, jnp.bfloat16
    w1t = params["w1"].astype(f32).T                                  # (7, 16)
    b1 = params["b1"].astype(f32).reshape(1, 16)
    w23 = jnp.dot(params["w3"].astype(f32), params["w2"].astype(f32), precision=hi)
    b23 = (jnp.dot(params["w3"].astype(f32), params["b2"].astype(f32), precision=hi)
           + params["b3"].astype(f32)).reshape(1, 16)
    w23t = w23.T                                                      # (16, 16)
    w4t = params["w4"].astype(f32).T                                  # (16, 7)
    b4 = params["b4"].astype(f32).reshape(1, 7)
    return (w1t.astype(bf16), b1, w23t.astype(bf16), b23, w4t.astype(bf16), b4)


def session_autoencoder(x, params, *, tile_b=4096):
    """x: (B, 7) float32. params: PyTorch-convention (out,in) weights / (out,) biases.

    Returns (B, 7) float32 -- same forward semantics as the PyTorch module,
    with the matmuls run in bf16 on the MXU (f32 accumulation).
    """
    B, F = x.shape
    assert F == 7, x.shape
    x = x.astype(jnp.float32)
    w1t, b1, w23t, b23, w4t, b4 = _prepare_params(params)

    # --- batch tiling --------------------------------------------------------
    tile_b = max(8, (int(tile_b) // 8) * 8)               # sublane-aligned tile
    if B < 8:
        tile_b = B                                        # single block, full batch dim
    else:
        tile_b = min(tile_b, (B // 8) * 8)                # block never exceeds the array
        if B >= 256:                                      # v7x megacore: >= 2 grid steps
            tile_b = min(tile_b, _round_up(pl.cdiv(B, 2), 128))
    grid = (pl.cdiv(B, tile_b),)                          # ragged last block is masked

    data_spec = pl.BlockSpec((tile_b, 7), lambda i: (i, 0))

    def const_spec(shape):
        # Full-array block, constant index_map: DMA'd once, stays resident in VMEM.
        return pl.BlockSpec(shape, lambda i: (0, 0))

    flops = 2 * (7 * 16 + 16 * 16 + 16 * 7) * B           # 960 flops / sample
    bytes_accessed = 2 * B * 7 * 4 + 2 * (7 * 16 + 16 * 16 + 16 * 7) + 4 * (16 + 16 + 7)

    return pl.pallas_call(
        session_ae_kernel,
        out_shape=jax.ShapeDtypeStruct((B, 7), jnp.float32),
        grid=grid,
        in_specs=[data_spec,
                  const_spec((7, 16)), const_spec((1, 16)),
                  const_spec((16, 16)), const_spec((1, 16)),
                  const_spec((16, 7)), const_spec((1, 7))],
        out_specs=data_spec,
        compiler_params=pltpu.CompilerParams(
            dimension_semantics=("parallel",),
            vmem_limit_bytes=32 * 1024 * 1024),
        cost_estimate=pl.CostEstimate(flops=flops,
                                      bytes_accessed=bytes_accessed,
                                      transcendentals=0),
    )(x, w1t, b1, w23t, b23, w4t, b4)


def init_params(key):
    """Deterministic init matching PyTorch nn.Linear defaults (U(+/- 1/sqrt(fan_in)))."""
    def linear(key, fan_in, fan_out):
        kw, kb = jax.random.split(key)
        bound = 1.0 / jnp.sqrt(fan_in)
        w = jax.random.uniform(kw, (fan_out, fan_in), jnp.float32, -bound, bound)
        b = jax.random.uniform(kb, (fan_out,), jnp.float32, -bound, bound)
        return w, b

    k1, k2, k3, k4 = jax.random.split(key, 4)
    w1, b1 = linear(k1, 7, 16)
    w2, b2 = linear(k2, 16, 4)
    w3, b3 = linear(k3, 4, 16)
    w4, b4 = linear(k4, 16, 7)
    return {"w1": w1, "b1": b1, "w2": w2, "b2": b2,
            "w3": w3, "b3": b3, "w4": w4, "b4": b4}


def reference_forward(x, p):
    """Pure-JAX f32 reference, exactly mirroring the PyTorch module."""
    h1 = jnp.maximum(x @ p["w1"].T + p["b1"], 0.0)
    z = h1 @ p["w2"].T + p["b2"]
    h2 = jnp.maximum(z @ p["w3"].T + p["b3"], 0.0)
    return h2 @ p["w4"].T + p["b4"]


def reference_forward_bf16(x, params):
    """Reference with the same fold + single-pass bf16 matmuls the kernel uses."""
    w1t, b1, w23t, b23, w4t, b4 = _prepare_params(params)
    bf16 = jnp.bfloat16
    h1 = jnp.maximum(jnp.dot(x.astype(bf16), w1t, preferred_element_type=jnp.float32) + b1, 0.0)
    h2 = jnp.maximum(jnp.dot(h1.astype(bf16), w23t, preferred_element_type=jnp.float32) + b23, 0.0)
    return jnp.dot(h2.astype(bf16), w4t, preferred_element_type=jnp.float32) + b4


if __name__ == "__main__":
    key = jax.random.PRNGKey(0)
    k_params, k_x = jax.random.split(key)
    params = init_params(k_params)

    # Small batch that is NOT a multiple of the tile: exercises the 2-step
    # 'parallel' grid (v7x megacore) and the masked ragged last block.
    B = 300
    x = jax.random.normal(k_x, (B, 7), jnp.float32)

    out = jax.block_until_ready(session_autoencoder(x, params))
    assert out.shape == (B, 7), out.shape

    # Tight check vs a reference using the same bottleneck fold and the same
    # single-pass bf16 matmul precision as the kernel.
    ref_bf16 = reference_forward_bf16(x, params)
    err_bf16 = float(jnp.max(jnp.abs(out - ref_bf16)))
    assert jnp.allclose(out, ref_bf16, atol=1e-4, rtol=1e-4), err_bf16

    # Semantics check vs the exact f32 PyTorch-equivalent forward (bf16 MXU
    # inputs => loosened tolerance).
    ref_f32 = reference_forward(x, params)
    err_f32 = float(jnp.max(jnp.abs(out - ref_f32)))
    assert jnp.allclose(out, ref_f32, atol=5e-2, rtol=5e-2), err_f32

    print("KERNEL_OK")
</pallas_src>

<mosaic_0001>
module attributes {stable_mosaic.version = 11 : i64} {
  func.func @session_ae_kernel(%arg0: i32, %arg1: memref<256x7xf32, #tpu.memory_space<vmem>>, %arg2: memref<7x16xbf16, #tpu.memory_space<vmem>>, %arg3: memref<1x16xf32, #tpu.memory_space<vmem>>, %arg4: memref<16x16xbf16, #tpu.memory_space<vmem>>, %arg5: memref<1x16xf32, #tpu.memory_space<vmem>>, %arg6: memref<16x7xbf16, #tpu.memory_space<vmem>>, %arg7: memref<1x7xf32, #tpu.memory_space<vmem>>, %arg8: memref<256x7xf32, #tpu.memory_space<vmem>>) attributes {dimension_semantics = [#tpu.dimension_semantics<parallel>], iteration_bounds = array<i64: 2>, scalar_prefetch = 0 : i64, scratch_operands = 0 : i64, tpu.core_type = #tpu.core_type<tc>, window_params = [{transform_indices = @transform_0, window_bounds = array<i64: 256, 7>}, {pipeline_mode = #tpu.pipeline_mode<synchronous>, transform_indices = @transform_1, window_bounds = array<i64: 7, 16>}, {pipeline_mode = #tpu.pipeline_mode<synchronous>, transform_indices = @transform_2, window_bounds = array<i64: 1, 16>}, {pipeline_mode = #tpu.pipeline_mode<synchronous>, transform_indices = @transform_3, window_bounds = array<i64: 16, 16>}, {pipeline_mode = #tpu.pipeline_mode<synchronous>, transform_indices = @transform_4, window_bounds = array<i64: 1, 16>}, {pipeline_mode = #tpu.pipeline_mode<synchronous>, transform_indices = @transform_5, window_bounds = array<i64: 16, 7>}, {pipeline_mode = #tpu.pipeline_mode<synchronous>, transform_indices = @transform_6, window_bounds = array<i64: 1, 7>}, {transform_indices = @transform_7, window_bounds = array<i64: 256, 7>}]} {
    %c0 = arith.constant 0 : index
    %c0_0 = arith.constant 0 : index
    %0 = vector.load %arg1[%c0, %c0_0] : memref<256x7xf32, #tpu.memory_space<vmem>>, vector<256x7xf32>
    %1 = arith.truncf %0 : vector<256x7xf32> to vector<256x7xbf16>
    %c0_1 = arith.constant 0 : index
    %c0_2 = arith.constant 0 : index
    %2 = vector.load %arg2[%c0_1, %c0_2] : memref<7x16xbf16, #tpu.memory_space<vmem>>, vector<7x16xbf16>
    %cst = arith.constant dense<0.000000e+00> : vector<256x16xf32>
    %3 = tpu.matmul %1, %2, %cst {dimension_numbers = #tpu.dot_dimension_numbers<[1], [0], [0], [1], [0, 0, 1, 1], [], []>} : vector<256x7xbf16>, vector<7x16xbf16>, vector<256x16xf32> -> vector<256x16xf32>
    %c0_3 = arith.constant 0 : index
    %c0_4 = arith.constant 0 : index
    %4 = vector.load %arg3[%c0_3, %c0_4] : memref<1x16xf32, #tpu.memory_space<vmem>>, vector<1x16xf32>
    %5 = vector.broadcast %4 : vector<1x16xf32> to vector<256x16xf32>
    %6 = arith.addf %3, %5 : vector<256x16xf32>
    %cst_5 = arith.constant 0.000000e+00 : f32
    %7 = vector.broadcast %cst_5 : f32 to vector<256x16xf32>
    %8 = arith.maximumf %6, %7 : vector<256x16xf32>
    %9 = arith.truncf %8 : vector<256x16xf32> to vector<256x16xbf16>
    %c0_6 = arith.constant 0 : index
    %c0_7 = arith.constant 0 : index
    %10 = vector.load %arg4[%c0_6, %c0_7] : memref<16x16xbf16, #tpu.memory_space<vmem>>, vector<16x16xbf16>
    %cst_8 = arith.constant dense<0.000000e+00> : vector<256x16xf32>
    %11 = tpu.matmul %9, %10, %cst_8 {dimension_numbers = #tpu.dot_dimension_numbers<[1], [0], [0], [1], [0, 0, 1, 1], [], []>} : vector<256x16xbf16>, vector<16x16xbf16>, vector<256x16xf32> -> vector<256x16xf32>
    %c0_9 = arith.constant 0 : index
    %c0_10 = arith.constant 0 : index
    %12 = vector.load %arg5[%c0_9, %c0_10] : memref<1x16xf32, #tpu.memory_space<vmem>>, vector<1x16xf32>
    %13 = vector.broadcast %12 : vector<1x16xf32> to vector<256x16xf32>
    %14 = arith.addf %11, %13 : vector<256x16xf32>
    %cst_11 = arith.constant 0.000000e+00 : f32
    %15 = vector.broadcast %cst_11 : f32 to vector<256x16xf32>
    %16 = arith.maximumf %14, %15 : vector<256x16xf32>
    %17 = arith.truncf %16 : vector<256x16xf32> to vector<256x16xbf16>
    %c0_12 = arith.constant 0 : index
    %c0_13 = arith.constant 0 : index
    %18 = vector.load %arg6[%c0_12, %c0_13] : memref<16x7xbf16, #tpu.memory_space<vmem>>, vector<16x7xbf16>
    %cst_14 = arith.constant dense<0.000000e+00> : vector<256x7xf32>
    %19 = tpu.matmul %17, %18, %cst_14 {dimension_numbers = #tpu.dot_dimension_numbers<[1], [0], [0], [1], [0, 0, 1, 1], [], []>} : vector<256x16xbf16>, vector<16x7xbf16>, vector<256x7xf32> -> vector<256x7xf32>
    %c0_15 = arith.constant 0 : index
    %c0_16 = arith.constant 0 : index
    %20 = vector.load %arg7[%c0_15, %c0_16] : memref<1x7xf32, #tpu.memory_space<vmem>>, vector<1x7xf32>
    %21 = vector.broadcast %20 : vector<1x7xf32> to vector<256x7xf32>
    %22 = arith.addf %19, %21 : vector<256x7xf32>
    %c0_17 = arith.constant 0 : index
    %c0_18 = arith.constant 0 : index
    %23 = vector.load %arg8[%c0_17, %c0_18] : memref<256x7xf32, #tpu.memory_space<vmem>>, vector<256x7xf32>
    tpu.vector_store %arg8[%c0_17, %c0_18], %22 {strides = array<i32>} : memref<256x7xf32, #tpu.memory_space<vmem>>, vector<256x7xf32>,
    return
  }
  func.func @transform_0(%arg0: i32) -> (i32, i32) {
    %c0_i32 = arith.constant 0 : i32
    %c0_i32_0 = arith.constant 0 : i32
    return %arg0, %c0_i32 : i32, i32
  }
  func.func @transform_1(%arg0: i32) -> (i32, i32) {
    %c0_i32 = arith.constant 0 : i32
    %c0_i32_0 = arith.constant 0 : i32
    %c0_i32_1 = arith.constant 0 : i32
    return %c0_i32, %c0_i32_0 : i32, i32
  }
  func.func @transform_2(%arg0: i32) -> (i32, i32) {
    %c0_i32 = arith.constant 0 : i32
    %c0_i32_0 = arith.constant 0 : i32
    %c0_i32_1 = arith.constant 0 : i32
    return %c0_i32, %c0_i32_0 : i32, i32
  }
  func.func @transform_3(%arg0: i32) -> (i32, i32) {
    %c0_i32 = arith.constant 0 : i32
    %c0_i32_0 = arith.constant 0 : i32
    %c0_i32_1 = arith.constant 0 : i32
    return %c0_i32, %c0_i32_0 : i32, i32
  }
  func.func @transform_4(%arg0: i32) -> (i32, i32) {
    %c0_i32 = arith.constant 0 : i32
    %c0_i32_0 = arith.constant 0 : i32
    %c0_i32_1 = arith.constant 0 : i32
    return %c0_i32, %c0_i32_0 : i32, i32
  }
  func.func @transform_5(%arg0: i32) -> (i32, i32) {
    %c0_i32 = arith.constant 0 : i32
    %c0_i32_0 = arith.constant 0 : i32
    %c0_i32_1 = arith.constant 0 : i32
    return %c0_i32, %c0_i32_0 : i32, i32
  }
  func.func @transform_6(%arg0: i32) -> (i32, i32) {
    %c0_i32 = arith.constant 0 : i32
    %c0_i32_0 = arith.constant 0 : i32
    %c0_i32_1 = arith.constant 0 : i32
    return %c0_i32, %c0_i32_0 : i32, i32
  }
  func.func @transform_7(%arg0: i32) -> (i32, i32) {
    %c0_i32 = arith.constant 0 : i32
    %c0_i32_0 = arith.constant 0 : i32
    return %arg0, %c0_i32 : i32, i32
  }
}

</mosaic_0001>

<llo_original>
// kernel: tpu_custom_call.1
$region0: #{tpu_custom_call.1}
  #allocation0 [shape = 'u32[]', space=smem, size = 0x4, offset = 0x4, fixed_abs, tag = 'smem constant byte address 0x4 - core index']
  #allocation1 [shape = 'u32[144,128]{1,0:T(1,128)}', space=vmem, size = 0x12000, scoped, tag = 'internal scratch']
  %s0 = inlined_call_operand.vmem [shape: f32[300,7], index: 0, kind: input, shape index: {}]
  %s1 = inlined_call_operand.vmem [shape: bf16[7,16], index: 1, kind: input, shape index: {}]
  %s2 = inlined_call_operand.vmem [shape: f32[1,16], index: 2, kind: input, shape index: {}]
  %s3 = inlined_call_operand.vmem [shape: bf16[16,16], index: 3, kind: input, shape index: {}]
  %s4 = inlined_call_operand.vmem [shape: f32[1,16], index: 4, kind: input, shape index: {}]
  %s5 = inlined_call_operand.vmem [shape: bf16[16,7], index: 5, kind: input, shape index: {}]
  %s6 = inlined_call_operand.vmem [shape: f32[1,7], index: 6, kind: input, shape index: {}]
  %s7 = inlined_call_operand.vmem [shape: f32[300,7], index: 7, kind: output, shape index: {}]
  %s8 = sld [smem:[#allocation0]]
  $region109: #{tpu_custom_call.1} parent=0
    _
  %s10 = ssub.s32 1, %s8
  %s11 = scalar_select 0, %s10, %s8
  $region1: #{tpu_custom_call.1} parent=0
    #allocation2 [shape = 'u8[262144]{0}', space=vmem, size = 0x40000, scoped, tag = 'output window, operand 0']
    loop: start=0, step=1, limit=4
    $region2: #{tpu_custom_call.1} parent=1 // loop_pre_header
      _
    $region3: #{tpu_custom_call.1} parent=1 // loop_header
      %s13 = sphi 0, %s17
      %p14 = scmp.ge.s32.totalorder %s13, 4
      %s23 = sphi 0, %s25
      %s26 = sphi 0, %s23
      %s27 = sphi 0, %s26
      %s43 = sphi 0, %s27
      %s47 = sphi 0, %s47
      %s49 = sphi 0, %s47
      %s50 = sphi 0, %s49
      %s64 = sphi 0, %s50
      %s68 = sphi 0, %s68
      %s70 = sphi 0, %s68
      %s71 = sphi 0, %s70
      %s85 = sphi 0, %s71
      %s89 = sphi 0, %s89
      %s91 = sphi 0, %s89
      %s92 = sphi 0, %s91
      %s106 = sphi 0, %s92
      %s110 = sphi 0, %s110
      %s112 = sphi 0, %s110
      %s113 = sphi 0, %s112
      %s127 = sphi 0, %s113
      %s131 = sphi 0, %s131
      %s133 = sphi 0, %s131
      %s134 = sphi 0, %s133
      %s148 = sphi 0, %s134
      %s152 = sphi 0, %s152
      %s154 = sphi 0, %s152
      %s155 = sphi 0, %s154
      %s169 = sphi 0, %s155
      %s175 = sphi 0, %s177
      %s178 = sphi 0, %s175
      %s179 = sphi 0, %s178
      %s195 = sphi 0, %s179
    $region4: #{tpu_custom_call.1} parent=1 // loop_header_branch
      %16 = sbr.rel (%p14) target = $region8
    $region5: #{tpu_custom_call.1} parent=1 // loop_body
      %s18 = ssub.s32 %s13, 1
      %s19 = ssub.s32 %s13, 2
      %s20 = sadd.s32 %s13, 1
      %s21 = ssub.s32 %s13, %s20
      %p22 = scmp.eq.s32.totalorder %s21, 0
      %s24 = sadd.s32 %s23, 1
      %s25 = scalar_select %p22, %s23, %s24
      %p28 = pneg %p22
      %p29 = scmp.eq.s32.totalorder %s13, 1
      %p30 = por %p28, %p29
      %p31 = scmp.ne.s32.totalorder %s23, %s26
      %p32 = scmp.eq.s32.totalorder %s13, 0
      %p33 = por %p31, %p32
      %p34 = scmp.ne.s32.totalorder %s23, %s26
      %p35 = scmp.eq.s32.totalorder %s18, 1
      %p36 = por %p34, %p35
      %p37 = scmp.ne.s32.totalorder %s26, %s27
      %p38 = scmp.eq.s32.totalorder %s18, 0
      %p39 = por %p37, %p38
      %p40 = scmp.ne.s32.totalorder %s26, %s27
      %p41 = scmp.eq.s32.totalorder %s19, 1
      %p42 = por %p40, %p41
      %p44 = scmp.ne.s32.totalorder %s27, %s43
      %p45 = scmp.eq.s32.totalorder %s19, 0
      %p46 = por %p44, %p45
      %s48 = sadd.s32 %s47, 1
      %p51 = scmp.eq.s32.totalorder %s13, 1
      %p52 = scmp.ne.s32.totalorder %s47, %s49
      %p53 = scmp.eq.s32.totalorder %s13, 0
      %p54 = por %p52, %p53
      %p55 = scmp.ne.s32.totalorder %s47, %s49
      %p56 = scmp.eq.s32.totalorder %s18, 1
      %p57 = por %p55, %p56
      %p58 = scmp.ne.s32.totalorder %s49, %s50
      %p59 = scmp.eq.s32.totalorder %s18, 0
      %p60 = por %p58, %p59
      %p61 = scmp.ne.s32.totalorder %s49, %s50
      %p62 = scmp.eq.s32.totalorder %s19, 1
      %p63 = por %p61, %p62
      %p65 = scmp.ne.s32.totalorder %s50, %s64
      %p66 = scmp.eq.s32.totalorder %s19, 0
      %p67 = por %p65, %p66
      %s69 = sadd.s32 %s68, 1
      %p72 = scmp.eq.s32.totalorder %s13, 1
      %p73 = scmp.ne.s32.totalorder %s68, %s70
      %p74 = scmp.eq.s32.totalorder %s13, 0
      %p75 = por %p73, %p74
      %p76 = scmp.ne.s32.totalorder %s68, %s70
      %p77 = scmp.eq.s32.totalorder %s18, 1
      %p78 = por %p76, %p77
      %p79 = scmp.ne.s32.totalorder %s70, %s71
      %p80 = scmp.eq.s32.totalorder %s18, 0
      %p81 = por %p79, %p80
      %p82 = scmp.ne.s32.totalorder %s70, %s71
      %p83 = scmp.eq.s32.totalorder %s19, 1
      %p84 = por %p82, %p83
      %p86 = scmp.ne.s32.totalorder %s71, %s85
      %p87 = scmp.eq.s32.totalorder %s19, 0
      %p88 = por %p86, %p87
      %s90 = sadd.s32 %s89, 1
      %p93 = scmp.eq.s32.totalorder %s13, 1
      %p94 = scmp.ne.s32.totalorder %s89, %s91
      %p95 = scmp.eq.s32.totalorder %s13, 0
      %p96 = por %p94, %p95
      %p97 = scmp.ne.s32.totalorder %s89, %s91
      %p98 = scmp.eq.s32.totalorder %s18, 1
      %p99 = por %p97, %p98
      %p100 = scmp.ne.s32.totalorder %s91, %s92
      %p101 = scmp.eq.s32.totalorder %s18, 0
      %p102 = por %p100, %p101
      %p103 = scmp.ne.s32.totalorder %s91, %s92
      %p104 = scmp.eq.s32.totalorder %s19, 1
      %p105 = por %p103, %p104
      %p107 = scmp.ne.s32.totalorder %s92, %s106
      %p108 = scmp.eq.s32.totalorder %s19, 0
      %p109 = por %p107, %p108
      %s111 = sadd.s32 %s110, 1
      %p114 = scmp.eq.s32.totalorder %s13, 1
      %p115 = scmp.ne.s32.totalorder %s110, %s112
      %p116 = scmp.eq.s32.totalorder %s13, 0
      %p117 = por %p115, %p116
      %p118 = scmp.ne.s32.totalorder %s110, %s112
      %p119 = scmp.eq.s32.totalorder %s18, 1
      %p120 = por %p118, %p119
      %p121 = scmp.ne.s32.totalorder %s112, %s113
      %p122 = scmp.eq.s32.totalorder %s18, 0
      %p123 = por %p121, %p122
      %p124 = scmp.ne.s32.totalorder %s112, %s113
      %p125 = scmp.eq.s32.totalorder %s19, 1
      %p126 = por %p124, %p125
      %p128 = scmp.ne.s32.totalorder %s113, %s127
      %p129 = scmp.eq.s32.totalorder %s19, 0
      %p130 = por %p128, %p129
      %s132 = sadd.s32 %s131, 1
      %p135 = scmp.eq.s32.totalorder %s13, 1
      %p136 = scmp.ne.s32.totalorder %s131, %s133
      %p137 = scmp.eq.s32.totalorder %s13, 0
      %p138 = por %p136, %p137
      %p139 = scmp.ne.s32.totalorder %s131, %s133
      %p140 = scmp.eq.s32.totalorder %s18, 1
      %p141 = por %p139, %p140
      %p142 = scmp.ne.s32.totalorder %s133, %s134
      %p143 = scmp.eq.s32.totalorder %s18, 0
      %p144 = por %p142, %p143
      %p145 = scmp.ne.s32.totalorder %s133, %s134
      %p146 = scmp.eq.s32.totalorder %s19, 1
      %p147 = por %p145, %p146
      %p149 = scmp.ne.s32.totalorder %s134, %s148
      %p150 = scmp.eq.s32.totalorder %s19, 0
      %p151 = por %p149, %p150
      %s153 = sadd.s32 %s152, 1
      %p156 = scmp.eq.s32.totalorder %s13, 1
      %p157 = scmp.ne.s32.totalorder %s152, %s154
      %p158 = scmp.eq.s32.totalorder %s13, 0
      %p159 = por %p157, %p158
      %p160 = scmp.ne.s32.totalorder %s152, %s154
      %p161 = scmp.eq.s32.totalorder %s18, 1
      %p162 = por %p160, %p161
      %p163 = scmp.ne.s32.totalorder %s154, %s155
      %p164 = scmp.eq.s32.totalorder %s18, 0
      %p165 = por %p163, %p164
      %p166 = scmp.ne.s32.totalorder %s154, %s155
      %p167 = scmp.eq.s32.totalorder %s19, 1
      %p168 = por %p166, %p167
      %p170 = scmp.ne.s32.totalorder %s155, %s169
      %p171 = scmp.eq.s32.totalorder %s19, 0
      %p172 = por %p170, %p171
      %s173 = ssub.s32 %s13, %s20
      %p174 = scmp.eq.s32.totalorder %s173, 0
      %s176 = sadd.s32 %s175, 1
      %s177 = scalar_select %p174, %s175, %s176
      %p180 = pneg %p174
      %p181 = scmp.eq.s32.totalorder %s13, 1
      %p182 = por %p180, %p181
      %p183 = scmp.ne.s32.totalorder %s175, %s178
      %p184 = scmp.eq.s32.totalorder %s13, 0
      %p185 = por %p183, %p184
      %p186 = scmp.ne.s32.totalorder %s175, %s178
      %p187 = scmp.eq.s32.totalorder %s18, 1
      %p188 = por %p186, %p187
      %p189 = scmp.ne.s32.totalorder %s178, %s179
      %p190 = scmp.eq.s32.totalorder %s18, 0
      %p191 = por %p189, %p190
      %p192 = scmp.ne.s32.totalorder %s178, %s179
      %p193 = scmp.eq.s32.totalorder %s19, 1
      %p194 = por %p192, %p193
      %p196 = scmp.ne.s32.totalorder %s179, %s195
      %p197 = scmp.eq.s32.totalorder %s19, 0
      %p198 = por %p196, %p197
      %p199 = scmp.le.s32.totalorder 1, %s13
      %p200 = scmp.lt.s32.totalorder %s13, 3
      %p201 = pnand %p199, %p200
      %p202 = pneg %p201
      // Predicated region
      $region9: #{tpu_custom_call.1} parent=5 // pred_check
        _
      $region10: #{tpu_custom_call.1} parent=5 // pred_check_branch
        %204 = sbr.rel (%p201) target = $region12
      $region11: #{tpu_custom_call.1} parent=5 // pred_region
        %s205 = ssub.s32 %s13, 1
        // Predicated region
        $region13: #{tpu_custom_call.1} parent=11 // pred_check
          %p206 = pneg %p60
        $region14: #{tpu_custom_call.1} parent=11 // pred_check_branch
          %208 = sbr.rel (%p206) target = $region16
        $region15: #{tpu_custom_call.1} parent=11 // pred_region
          _
        $region16: #{tpu_custom_call.1} parent=11 // pred_fallthru
          _
        // Predicated region
        $region17: #{tpu_custom_call.1} parent=11 // pred_check
          %p209 = pneg %p81
        $region18: #{tpu_custom_call.1} parent=11 // pred_check_branch
          %211 = sbr.rel (%p209) target = $region20
        $region19: #{tpu_custom_call.1} parent=11 // pred_region
          _
        $region20: #{tpu_custom_call.1} parent=11 // pred_fallthru
          _
        // Predicated region
        $region21: #{tpu_custom_call.1} parent=11 // pred_check
          %p212 = pneg %p102
        $region22: #{tpu_custom_call.1} parent=11 // pred_check_branch
          %214 = sbr.rel (%p212) target = $region24
        $region23: #{tpu_custom_call.1} parent=11 // pred_region
          _
        $region24: #{tpu_custom_call.1} parent=11 // pred_fallthru
          _
        // Predicated region
        $region25: #{tpu_custom_call.1} parent=11 // pred_check
          %p215 = pneg %p123
        $region26: #{tpu_custom_call.1} parent=11 // pred_check_branch
          %217 = sbr.rel (%p215) target = $region28
        $region27: #{tpu_custom_call.1} parent=11 // pred_region
          _
        $region28: #{tpu_custom_call.1} parent=11 // pred_fallthru
          _
        // Predicated region
        $region29: #{tpu_custom_call.1} parent=11 // pred_check
          %p218 = pneg %p144
        $region30: #{tpu_custom_call.1} parent=11 // pred_check_branch
          %220 = sbr.rel (%p218) target = $region32
        $region31: #{tpu_custom_call.1} parent=11 // pred_region
          _
        $region32: #{tpu_custom_call.1} parent=11 // pred_fallthru
          _
        // Predicated region
        $region33: #{tpu_custom_call.1} parent=11 // pred_check
          %p221 = pneg %p165
        $region34: #{tpu_custom_call.1} parent=11 // pred_check_branch
          %223 = sbr.rel (%p221) target = $region36
        $region35: #{tpu_custom_call.1} parent=11 // pred_region
          _
        $region36: #{tpu_custom_call.1} parent=11 // pred_fallthru
          _
      $region12: #{tpu_custom_call.1} parent=5 // pred_fallthru
        _
      %p224 = scmp.lt.s32.totalorder %s13, 2
      // Predicated region
      $region37: #{tpu_custom_call.1} parent=5 // pred_check
        %p225 = pneg %p224
      $region38: #{tpu_custom_call.1} parent=5 // pred_check_branch
        %227 = sbr.rel (%p225) target = $region40
      $region39: #{tpu_custom_call.1} parent=5 // pred_region
        // Predicated region
        $region41: #{tpu_custom_call.1} parent=39 // pred_check
          %p228 = pneg %p33
        $region42: #{tpu_custom_call.1} parent=39 // pred_check_branch
          %230 = sbr.rel (%p228) target = $region44
        $region43: #{tpu_custom_call.1} parent=39 // pred_region
          %s231 = smul.u32 32, %s13
          %s232 = ssub.s32 38, %s231
          %p233 = scmp.lt.s32.totalorder %s232, 32
          %s234 = scalar_select %p233, %s232, 32
          %s235 = smul.u32 128, %s234
          %p236 = scmp.lt.s32.totalorder %s231, 37
          %s237 = scalar_select %p236, %s231, 37
          %s238 = smul.addr %s237, 8
          %s239 = scalar_lea.vmem %s0, %s238
          %s240 = smul.u32 32, %s13
          %s241 = ssub.s32 38, %s240
          %p242 = scmp.lt.s32.totalorder %s241, 32
          %s243 = scalar_select %p242, %s241, 32
          %s244 = smul.u32 128, %s243
        $region44: #{tpu_custom_call.1} parent=39 // pred_fallthru
          _
      $region40: #{tpu_custom_call.1} parent=5 // pred_fallthru
        _
      %p245 = scmp.le.s32.totalorder 1, %s13
      %p246 = scmp.lt.s32.totalorder %s13, 3
      %p247 = pnand %p245, %p246
      %p248 = pneg %p247
      // Predicated region
      $region45: #{tpu_custom_call.1} parent=5 // pred_check
        _
      $region46: #{tpu_custom_call.1} parent=5 // pred_check_branch
        %250 = sbr.rel (%p247) target = $region48
      $region47: #{tpu_custom_call.1} parent=5 // pred_region
        %s251 = ssub.s32 %s13, 1
        %s252 = smul.u32 32, %s18
        %s253 = ssub.s32 38, %s252
        %p254 = scmp.lt.s32.totalorder %s253, 32
        %s255 = scalar_select %p254, %s253, 32
        %s256 = smul.u32 128, %s255
        %p257 = scmp.lt.s32.totalorder %s252, 37
        %s258 = scalar_select %p257, %s252, 37
        %s259 = smul.addr %s258, 8
        %s260 = scalar_lea.vmem %s0, %s259
        %p261 = pneg %p39
        %p262 = pneg %p36
        %p263 = pneg %p60
        %p264 = pneg %p57
        %p265 = pneg %p81
        %p266 = pneg %p78
        %p267 = pneg %p102
        %p268 = pneg %p99
        %p269 = pneg %p123
        %p270 = pneg %p120
        %p271 = pneg %p144
        %p272 = pneg %p141
        %p273 = pneg %p165
        %p274 = pneg %p162
        %p275 = pneg %p191
        %p276 = pneg %p188
        %s277 = sand.u32 %s178, 1
        %s278 = sand.u32 %s178, 1
        %s279 = smul.addr %s278, 256
        %s280 = scalar_lea.vmem [#allocation2], %s279
        %s281 = smul.u32 32, %s18
        %s282 = ssub.s32 38, %s281
        %p283 = scmp.lt.s32.totalorder %s282, 32
        %s284 = scalar_select %p283, %s282, 32
        %s285 = smul.u32 128, %s284
        %p286 = scmp.lt.s32.totalorder %s281, 37
        %s287 = scalar_select %p286, %s281, 37
        %s288 = smul.addr %s287, 8
        %s289 = scalar_lea.vmem %s0, %s288
        %s290 = smul.u32 32, %s18
        %s291 = ssub.s32 38, %s290
        %p292 = scmp.lt.s32.totalorder %s291, 32
        %s293 = scalar_select %p292, %s291, 32
        %s294 = smul.u32 128, %s293
        %s295 = smul.u32 32, %s18
        %s296 = ssub.s32 38, %s295
        %p297 = scmp.lt.s32.totalorder %s296, 32
        %s298 = scalar_select %p297, %s296, 32
        %s299 = smul.u32 128, %s298
        %v301 = vld [vmem:[%s289] sm:$0xff]
        %v302 = vld [vmem:[%s289 + $0x8] sm:$0xff]
        %v303 = vld [vmem:[%s289 + $0x10] sm:$0xff]
        %v304 = vld [vmem:[%s289 + $0x18] sm:$0xff]
        %v305 = vld [vmem:[%s289 + $0x20] sm:$0xff]
        %v306 = vld [vmem:[%s289 + $0x28] sm:$0xff]
        %v307 = vld [vmem:[%s289 + $0x30] sm:$0xff]
        %v308 = vld [vmem:[%s289 + $0x38] sm:$0xff]
        %v309 = vld [vmem:[%s289 + $0x40] sm:$0xff]
        %v310 = vld [vmem:[%s289 + $0x48] sm:$0xff]
        %v311 = vld [vmem:[%s289 + $0x50] sm:$0xff]
        %v312 = vld [vmem:[%s289 + $0x58] sm:$0xff]
        %v313 = vld [vmem:[%s289 + $0x60] sm:$0xff]
        %v314 = vld [vmem:[%s289 + $0x68] sm:$0xff]
        %v315 = vld [vmem:[%s289 + $0x70] sm:$0xff]
        %v316 = vld [vmem:[%s289 + $0x78] sm:$0xff]
        %v317 = vld [vmem:[%s289 + $0x80] sm:$0xff]
        %v318 = vld [vmem:[%s289 + $0x88] sm:$0xff]
        %v319 = vld [vmem:[%s289 + $0x90] sm:$0xff]
        %v320 = vld [vmem:[%s289 + $0x98] sm:$0xff]
        %v321 = vld [vmem:[%s289 + $0xa0] sm:$0xff]
        %v322 = vld [vmem:[%s289 + $0xa8] sm:$0xff]
        %v323 = vld [vmem:[%s289 + $0xb0] sm:$0xff]
        %v324 = vld [vmem:[%s289 + $0xb8] sm:$0xff]
        %v325 = vld [vmem:[%s289 + $0xc0] sm:$0xff]
        %v326 = vld [vmem:[%s289 + $0xc8] sm:$0xff]
        %v327 = vld [vmem:[%s289 + $0xd0] sm:$0xff]
        %v328 = vld [vmem:[%s289 + $0xd8] sm:$0xff]
        %v329 = vld [vmem:[%s289 + $0xe0] sm:$0xff]
        %v330 = vld [vmem:[%s289 + $0xe8] sm:$0xff]
        %v331 = vld [vmem:[%s289 + $0xf0] sm:$0xff]
        %v332 = vld [vmem:[%s289 + $0xf8] sm:$0xff]
        %v333 = vpack.c.bf16 %v302, %v301
        %v334 = vpack.c.bf16 %v304, %v303
        %v335 = vpack.c.bf16 %v306, %v305
        %v336 = vpack.c.bf16 %v308, %v307
        %v337 = vpack.c.bf16 %v310, %v309
        %v338 = vpack.c.bf16 %v312, %v311
        %v339 = vpack.c.bf16 %v314, %v313
        %v340 = vpack.c.bf16 %v316, %v315
        %v341 = vpack.c.bf16 %v318, %v317
        %v342 = vpack.c.bf16 %v320, %v319
        %v343 = vpack.c.bf16 %v322, %v321
        %v344 = vpack.c.bf16 %v324, %v323
        %v345 = vpack.c.bf16 %v326, %v325
        %v346 = vpack.c.bf16 %v328, %v327
        %v347 = vpack.c.bf16 %v330, %v329
        %v348 = vpack.c.bf16 %v332, %v331
        %v349 = vld [vmem:[%s1] sm:$0xf]
        %v350 = vld [vmem:[%s2] sm:$0x1]
        %v352 = vlaneseq
        %v353 = vshrl.u32 %v352, 7
        %v354 = vsub.s32 0, %v353
        %v355 = vrot.slane %v350, %v354
        %vm357 = vcmask 56320
        %v359 = vsel %vm357, %v333, 0
        %v362 = vsel %vm357, %v334, 0
        %v365 = vsel %vm357, %v335, 0
        %v368 = vsel %vm357, %v336, 0
        %v371 = vsel %vm357, %v337, 0
        %v374 = vsel %vm357, %v338, 0
        %v377 = vsel %vm357, %v339, 0
        %v380 = vsel %vm357, %v340, 0
        %v383 = vsel %vm357, %v341, 0
        %v386 = vsel %vm357, %v342, 0
        %v389 = vsel %vm357, %v343, 0
        %v392 = vsel %vm357, %v344, 0
        %v395 = vsel %vm357, %v345, 0
        %v398 = vsel %vm357, %v346, 0
        %v401 = vsel %vm357, %v347, 0
        %v404 = vsel %vm357, %v348, 0
        %vm406 = vcmask 1042432
        %vm407 = vcmask 1043456
        %v408 = vsel %vm406, 4294967295, 65535
        %v409 = vsel %vm407, %v408, 0
        %v411 = vand.u32 %v349, %v409
        %413 = vmatprep.subr.bf16.mxu0 0
        %414 = vmatpush1.bf16.msra.mxu0 %v411
        %415 = vmatprep.subr.bf16.mxu0 0
        %416 = vmatpush1.bf16.msra.mxu0 0
        %417 = vmatprep.subr.bf16.mxu0 0
        %418 = vmatpush1.bf16.msra.mxu0 0
        %419 = vmatprep.subr.bf16.mxu0 0
        %420 = vmatpush1.bf16.msra.mxu0 0
        %421 = vmatprep.subr.bf16.mxu0 0
        %422 = vmatpush1.bf16.msra.mxu0 0
        %423 = vmatprep.subr.bf16.mxu0 0
        %424 = vmatpush1.bf16.msra.mxu0 0
        %425 = vmatprep.subr.bf16.mxu0 0
        %426 = vmatpush1.bf16.msra.mxu0 0
        %427 = vmatprep.subr.bf16.mxu0 0
        %428 = vmatpush1.bf16.msra.mxu0 0
        %429 = vmatprep.subr.bf16.mxu0 0
        %430 = vmatpush1.bf16.msra.mxu0 0
        %431 = vmatprep.subr.bf16.mxu0 0
        %432 = vmatpush1.bf16.msra.mxu0 0
        %433 = vmatprep.subr.bf16.mxu0 0
        %434 = vmatpush1.bf16.msra.mxu0 0
        %435 = vmatprep.subr.bf16.mxu0 0
        %436 = vmatpush1.bf16.msra.mxu0 0
        %437 = vmatprep.subr.bf16.mxu0 0
        %438 = vmatpush1.bf16.msra.mxu0 0
        %439 = vmatprep.subr.bf16.mxu0 0
        %440 = vmatpush1.bf16.msra.mxu0 0
        %441 = vmatprep.subr.bf16.mxu0 0
        %442 = vmatpush1.bf16.msra.mxu0 0
        %443 = vmatprep.subr.bf16.mxu0 0
        %444 = vmatpush1.bf16.msra.mxu0 0
        %445 = vmatprep.mubr.bf16.mxu0 0
        %446 = vmatmul.mubr.bf16.gmra.mrb[0].mxu0 %v359
        %v447 = vpop.f32.mrb[0].mxu0
        %v448 = vadd.f32 %v355, %v447
        %v449 = vpop.f32.mrb[0].mxu0
        %v450 = vpop.f32.mrb[0].mxu0
        %v451 = vadd.f32 %v355, %v450
        %v452 = vpop.f32.mrb[0].mxu0
        %453 = vmatprep.mubr.bf16.mxu0 0
        %454 = vmatmul.mubr.bf16.gmra.mrb[0].mxu0 %v362
        %v455 = vpop.f32.mrb[0].mxu0
        %v456 = vadd.f32 %v355, %v455
        %v457 = vpop.f32.mrb[0].mxu0
        %v458 = vpop.f32.mrb[0].mxu0
        %v459 = vadd.f32 %v355, %v458
        %v460 = vpop.f32.mrb[0].mxu0
        %461 = vmatprep.mubr.bf16.mxu0 0
        %462 = vmatmul.mubr.bf16.gmra.mrb[0].mxu0 %v365
        %v463 = vpop.f32.mrb[0].mxu0
        %v464 = vadd.f32 %v355, %v463
        %v465 = vpop.f32.mrb[0].mxu0
        %v466 = vpop.f32.mrb[0].mxu0
        %v467 = vadd.f32 %v355, %v466
        %v468 = vpop.f32.mrb[0].mxu0
        %469 = vmatprep.mubr.bf16.mxu0 0
        %470 = vmatmul.mubr.bf16.gmra.mrb[0].mxu0 %v368
        %v471 = vpop.f32.mrb[0].mxu0
        %v472 = vadd.f32 %v355, %v471
        %v473 = vpop.f32.mrb[0].mxu0
        %v474 = vpop.f32.mrb[0].mxu0
        %v475 = vadd.f32 %v355, %v474
        %v476 = vpop.f32.mrb[0].mxu0
        %477 = vmatprep.mubr.bf16.mxu0 0
        %478 = vmatmul.mubr.bf16.gmra.mrb[0].mxu0 %v371
        %v479 = vpop.f32.mrb[0].mxu0
        %v480 = vadd.f32 %v355, %v479
        %v481 = vpop.f32.mrb[0].mxu0
        %v482 = vpop.f32.mrb[0].mxu0
        %v483 = vadd.f32 %v355, %v482
        %v484 = vpop.f32.mrb[0].mxu0
        %485 = vmatprep.mubr.bf16.mxu0 0
        %486 = vmatmul.mubr.bf16.gmra.mrb[0].mxu0 %v374
        %v487 = vpop.f32.mrb[0].mxu0
        %v488 = vadd.f32 %v355, %v487
        %v489 = vpop.f32.mrb[0].mxu0
        %v490 = vpop.f32.mrb[0].mxu0
        %v491 = vadd.f32 %v355, %v490
        %v492 = vpop.f32.mrb[0].mxu0
        %493 = vmatprep.mubr.bf16.mxu0 0
        %494 = vmatmul.mubr.bf16.gmra.mrb[0].mxu0 %v377
        %v495 = vpop.f32.mrb[0].mxu0
        %v496 = vadd.f32 %v355, %v495
        %v497 = vpop.f32.mrb[0].mxu0
        %v498 = vpop.f32.mrb[0].mxu0
        %v499 = vadd.f32 %v355, %v498
        %v500 = vpop.f32.mrb[0].mxu0
        %501 = vmatprep.mubr.bf16.mxu0 0
        %502 = vmatmul.mubr.bf16.gmra.mrb[0].mxu0 %v380
        %v503 = vpop.f32.mrb[0].mxu0
        %v504 = vadd.f32 %v355, %v503
        %v505 = vpop.f32.mrb[0].mxu0
        %v506 = vpop.f32.mrb[0].mxu0
        %v507 = vadd.f32 %v355, %v506
        %v508 = vpop.f32.mrb[0].mxu0
        %509 = vmatprep.mubr.bf16.mxu0 0
        %510 = vmatmul.mubr.bf16.gmra.mrb[0].mxu0 %v383
        %v511 = vpop.f32.mrb[0].mxu0
        %v512 = vadd.f32 %v355, %v511
        %v513 = vpop.f32.mrb[0].mxu0
        %v514 = vpop.f32.mrb[0].mxu0
        %v515 = vadd.f32 %v355, %v514
        %v516 = vpop.f32.mrb[0].mxu0
        %517 = vmatprep.mubr.bf16.mxu0 0
        %518 = vmatmul.mubr.bf16.gmra.mrb[0].mxu0 %v386
        %v519 = vpop.f32.mrb[0].mxu0
        %v520 = vadd.f32 %v355, %v519
        %v521 = vpop.f32.mrb[0].mxu0
        %v522 = vpop.f32.mrb[0].mxu0
        %v523 = vadd.f32 %v355, %v522
        %v524 = vpop.f32.mrb[0].mxu0
        %525 = vmatprep.mubr.bf16.mxu0 0
        %526 = vmatmul.mubr.bf16.gmra.mrb[0].mxu0 %v389
        %v527 = vpop.f32.mrb[0].mxu0
        %v528 = vadd.f32 %v355, %v527
        %v529 = vpop.f32.mrb[0].mxu0
        %v530 = vpop.f32.mrb[0].mxu0
        %v531 = vadd.f32 %v355, %v530
        %v532 = vpop.f32.mrb[0].mxu0
        %533 = vmatprep.mubr.bf16.mxu0 0
        %534 = vmatmul.mubr.bf16.gmra.mrb[0].mxu0 %v392
        %v535 = vpop.f32.mrb[0].mxu0
        %v536 = vadd.f32 %v355, %v535
        %v537 = vpop.f32.mrb[0].mxu0
        %v538 = vpop.f32.mrb[0].mxu0
        %v539 = vadd.f32 %v355, %v538
        %v540 = vpop.f32.mrb[0].mxu0
        %541 = vmatprep.mubr.bf16.mxu0 0
        %542 = vmatmul.mubr.bf16.gmra.mrb[0].mxu0 %v395
        %v543 = vpop.f32.mrb[0].mxu0
        %v544 = vadd.f32 %v355, %v543
        %v545 = vpop.f32.mrb[0].mxu0
        %v546 = vpop.f32.mrb[0].mxu0
        %v547 = vadd.f32 %v355, %v546
        %v548 = vpop.f32.mrb[0].mxu0
        %549 = vmatprep.mubr.bf16.mxu0 0
        %550 = vmatmul.mubr.bf16.gmra.mrb[0].mxu0 %v398
        %v551 = vpop.f32.mrb[0].mxu0
        %v552 = vadd.f32 %v355, %v551
        %v553 = vpop.f32.mrb[0].mxu0
        %v554 = vpop.f32.mrb[0].mxu0
        %v555 = vadd.f32 %v355, %v554
        %v556 = vpop.f32.mrb[0].mxu0
        %557 = vmatprep.mubr.bf16.mxu0 0
        %558 = vmatmul.mubr.bf16.gmra.mrb[0].mxu0 %v401
        %v559 = vpop.f32.mrb[0].mxu0
        %v560 = vadd.f32 %v355, %v559
        %v561 = vpop.f32.mrb[0].mxu0
        %v562 = vpop.f32.mrb[0].mxu0
        %v563 = vadd.f32 %v355, %v562
        %v564 = vpop.f32.mrb[0].mxu0
        %565 = vmatprep.mubr.bf16.mxu0 0
        %566 = vmatmul.mubr.bf16.gmra.mrb[0].mxu0 %v404
        %v567 = vpop.f32.mrb[0].mxu0
        %v568 = vadd.f32 %v355, %v567
        %v569 = vpop.f32.mrb[0].mxu0
        %v570 = vpop.f32.mrb[0].mxu0
        %v571 = vadd.f32 %v355, %v570
        %v572 = vpop.f32.mrb[0].mxu0
        %573 = vdwg.mxu0
        %v574 = vmax.f32 %v448, 0.0
        %v575 = vmax.f32 %v451, 0.0
        %v576 = vmax.f32 %v456, 0.0
        %v577 = vmax.f32 %v459, 0.0
        %v578 = vmax.f32 %v464, 0.0
        %v579 = vmax.f32 %v467, 0.0
        %v580 = vmax.f32 %v472, 0.0
        %v581 = vmax.f32 %v475, 0.0
        %v582 = vmax.f32 %v480, 0.0
        %v583 = vmax.f32 %v483, 0.0
        %v584 = vmax.f32 %v488, 0.0
        %v585 = vmax.f32 %v491, 0.0
        %v586 = vmax.f32 %v496, 0.0
        %v587 = vmax.f32 %v499, 0.0
        %v588 = vmax.f32 %v504, 0.0
        %v589 = vmax.f32 %v507, 0.0
        %v590 = vmax.f32 %v512, 0.0
        %v591 = vmax.f32 %v515, 0.0
        %v592 = vmax.f32 %v520, 0.0
        %v593 = vmax.f32 %v523, 0.0
        %v594 = vmax.f32 %v528, 0.0
        %v595 = vmax.f32 %v531, 0.0
        %v596 = vmax.f32 %v536, 0.0
        %v597 = vmax.f32 %v539, 0.0
        %v598 = vmax.f32 %v544, 0.0
        %v599 = vmax.f32 %v547, 0.0
        %v600 = vmax.f32 %v552, 0.0
        %v601 = vmax.f32 %v555, 0.0
        %v602 = vmax.f32 %v560, 0.0
        %v603 = vmax.f32 %v563, 0.0
        %v604 = vmax.f32 %v568, 0.0
        %v605 = vmax.f32 %v571, 0.0
        %v606 = vpack.c.bf16 %v575, %v574
        %v607 = vpack.c.bf16 %v577, %v576
        %v608 = vpack.c.bf16 %v579, %v578
        %v609 = vpack.c.bf16 %v581, %v580
        %v610 = vpack.c.bf16 %v583, %v582
        %v611 = vpack.c.bf16 %v585, %v584
        %v612 = vpack.c.bf16 %v587, %v586
        %v613 = vpack.c.bf16 %v589, %v588
        %v614 = vpack.c.bf16 %v591, %v590
        %v615 = vpack.c.bf16 %v593, %v592
        %v616 = vpack.c.bf16 %v595, %v594
        %v617 = vpack.c.bf16 %v597, %v596
        %v618 = vpack.c.bf16 %v599, %v598
        %v619 = vpack.c.bf16 %v601, %v600
        %v620 = vpack.c.bf16 %v603, %v602
        %v621 = vpack.c.bf16 %v605, %v604
        %v622 = vld [vmem:[%s3] sm:$0xf]
        %v623 = vld [vmem:[%s3 + $0x4] sm:$0xf]
        %v624 = vld [vmem:[%s4] sm:$0x1]
        %v626 = vlaneseq
        %v627 = vshrl.u32 %v626, 7
        %v628 = vsub.s32 0, %v627
        %v629 = vrot.slane %v624, %v628
        %v633 = vunpack.c.l.b16 %v622
        %v634 = vunpack.c.l.b16 %v623
        %v635 = vpack.c.b16 %v634, %v633
        %vm637 = vcmask 130048
        %v639 = vsel %vm637, %v606, 0
        %v642 = vsel %vm637, %v607, 0
        %v645 = vsel %vm637, %v608, 0
        %v648 = vsel %vm637, %v609, 0
        %v651 = vsel %vm637, %v610, 0
        %v654 = vsel %vm637, %v611, 0
        %v657 = vsel %vm637, %v612, 0
        %v660 = vsel %vm637, %v613, 0
        %v663 = vsel %vm637, %v614, 0
        %v666 = vsel %vm637, %v615, 0
        %v669 = vsel %vm637, %v616, 0
        %v672 = vsel %vm637, %v617, 0
        %v675 = vsel %vm637, %v618, 0
        %v678 = vsel %vm637, %v619, 0
        %v681 = vsel %vm637, %v620, 0
        %v684 = vsel %vm637, %v621, 0
        %686 = vmatprep.subr.bf16.mxu0 0
        %687 = vmatpush1.bf16.msra.mxu0 %v635
        %688 = vmatprep.subr.bf16.mxu0 0
        %689 = vmatpush1.bf16.msra.mxu0 0
        %690 = vmatprep.subr.bf16.mxu0 0
        %691 = vmatpush1.bf16.msra.mxu0 0
        %692 = vmatprep.subr.bf16.mxu0 0
        %693 = vmatpush1.bf16.msra.mxu0 0
        %694 = vmatprep.subr.bf16.mxu0 0
        %695 = vmatpush1.bf16.msra.mxu0 0
        %696 = vmatprep.subr.bf16.mxu0 0
        %697 = vmatpush1.bf16.msra.mxu0 0
        %698 = vmatprep.subr.bf16.mxu0 0
        %699 = vmatpush1.bf16.msra.mxu0 0
        %700 = vmatprep.subr.bf16.mxu0 0
        %701 = vmatpush1.bf16.msra.mxu0 0
        %702 = vmatprep.subr.bf16.mxu0 0
        %703 = vmatpush1.bf16.msra.mxu0 0
        %704 = vmatprep.subr.bf16.mxu0 0
        %705 = vmatpush1.bf16.msra.mxu0 0
        %706 = vmatprep.subr.bf16.mxu0 0
        %707 = vmatpush1.bf16.msra.mxu0 0
        %708 = vmatprep.subr.bf16.mxu0 0
        %709 = vmatpush1.bf16.msra.mxu0 0
        %710 = vmatprep.subr.bf16.mxu0 0
        %711 = vmatpush1.bf16.msra.mxu0 0
        %712 = vmatprep.subr.bf16.mxu0 0
        %713 = vmatpush1.bf16.msra.mxu0 0
        %714 = vmatprep.subr.bf16.mxu0 0
        %715 = vmatpush1.bf16.msra.mxu0 0
        %716 = vmatprep.subr.bf16.mxu0 0
        %717 = vmatpush1.bf16.msra.mxu0 0
        %718 = vmatprep.mubr.bf16.mxu0 0
        %719 = vmatmul.mubr.bf16.gmra.mrb[0].mxu0 %v639
        %v720 = vpop.f32.mrb[0].mxu0
        %v721 = vadd.f32 %v629, %v720
        %v722 = vpop.f32.mrb[0].mxu0
        %v723 = vpop.f32.mrb[0].mxu0
        %v724 = vadd.f32 %v629, %v723
        %v725 = vpop.f32.mrb[0].mxu0
        %726 = vmatprep.mubr.bf16.mxu0 0
        %727 = vmatmul.mubr.bf16.gmra.mrb[0].mxu0 %v642
        %v728 = vpop.f32.mrb[0].mxu0
        %v729 = vadd.f32 %v629, %v728
        %v730 = vpop.f32.mrb[0].mxu0
        %v731 = vpop.f32.mrb[0].mxu0
        %v732 = vadd.f32 %v629, %v731
        %v733 = vpop.f32.mrb[0].mxu0
        %734 = vmatprep.mubr.bf16.mxu0 0
        %735 = vmatmul.mubr.bf16.gmra.mrb[0].mxu0 %v645
        %v736 = vpop.f32.mrb[0].mxu0
        %v737 = vadd.f32 %v629, %v736
        %v738 = vpop.f32.mrb[0].mxu0
        %v739 = vpop.f32.mrb[0].mxu0
        %v740 = vadd.f32 %v629, %v739
        %v741 = vpop.f32.mrb[0].mxu0
        %742 = vmatprep.mubr.bf16.mxu0 0
        %743 = vmatmul.mubr.bf16.gmra.mrb[0].mxu0 %v648
        %v744 = vpop.f32.mrb[0].mxu0
        %v745 = vadd.f32 %v629, %v744
        %v746 = vpop.f32.mrb[0].mxu0
        %v747 = vpop.f32.mrb[0].mxu0
        %v748 = vadd.f32 %v629, %v747
        %v749 = vpop.f32.mrb[0].mxu0
        %750 = vmatprep.mubr.bf16.mxu0 0
        %751 = vmatmul.mubr.bf16.gmra.mrb[0].mxu0 %v651
        %v752 = vpop.f32.mrb[0].mxu0
        %v753 = vadd.f32 %v629, %v752
        %v754 = vpop.f32.mrb[0].mxu0
        %v755 = vpop.f32.mrb[0].mxu0
        %v756 = vadd.f32 %v629, %v755
        %v757 = vpop.f32.mrb[0].mxu0
        %758 = vmatprep.mubr.bf16.mxu0 0
        %759 = vmatmul.mubr.bf16.gmra.mrb[0].mxu0 %v654
        %v760 = vpop.f32.mrb[0].mxu0
        %v761 = vadd.f32 %v629, %v760
        %v762 = vpop.f32.mrb[0].mxu0
        %v763 = vpop.f32.mrb[0].mxu0
        %v764 = vadd.f32 %v629, %v763
        %v765 = vpop.f32.mrb[0].mxu0
        %766 = vmatprep.mubr.bf16.mxu0 0
        %767 = vmatmul.mubr.bf16.gmra.mrb[0].mxu0 %v657
        %v768 = vpop.f32.mrb[0].mxu0
        %v769 = vadd.f32 %v629, %v768
        %v770 = vpop.f32.mrb[0].mxu0
        %v771 = vpop.f32.mrb[0].mxu0
        %v772 = vadd.f32 %v629, %v771
        %v773 = vpop.f32.mrb[0].mxu0
        %774 = vmatprep.mubr.bf16.mxu0 0
        %775 = vmatmul.mubr.bf16.gmra.mrb[0].mxu0 %v660
        %v776 = vpop.f32.mrb[0].mxu0
        %v777 = vadd.f32 %v629, %v776
        %v778 = vpop.f32.mrb[0].mxu0
        %v779 = vpop.f32.mrb[0].mxu0
        %v780 = vadd.f32 %v629, %v779
        %v781 = vpop.f32.mrb[0].mxu0
        %782 = vmatprep.mubr.bf16.mxu0 0
        %783 = vmatmul.mubr.bf16.gmra.mrb[0].mxu0 %v663
        %v784 = vpop.f32.mrb[0].mxu0
        %v785 = vadd.f32 %v629, %v784
        %v786 = vpop.f32.mrb[0].mxu0
        %v787 = vpop.f32.mrb[0].mxu0
        %v788 = vadd.f32 %v629, %v787
        %v789 = vpop.f32.mrb[0].mxu0
        %790 = vmatprep.mubr.bf16.mxu0 0
        %791 = vmatmul.mubr.bf16.gmra.mrb[0].mxu0 %v666
        %v792 = vpop.f32.mrb[0].mxu0
        %v793 = vadd.f32 %v629, %v792
        %v794 = vpop.f32.mrb[0].mxu0
        %v795 = vpop.f32.mrb[0].mxu0
        %v796 = vadd.f32 %v629, %v795
        %v797 = vpop.f32.mrb[0].mxu0
        %798 = vmatprep.mubr.bf16.mxu0 0
        %799 = vmatmul.mubr.bf16.gmra.mrb[0].mxu0 %v669
        %v800 = vpop.f32.mrb[0].mxu0
        %v801 = vadd.f32 %v629, %v800
        %v802 = vpop.f32.mrb[0].mxu0
        %v803 = vpop.f32.mrb[0].mxu0
        %v804 = vadd.f32 %v629, %v803
        %v805 = vpop.f32.mrb[0].mxu0
        %806 = vmatprep.mubr.bf16.mxu0 0
        %807 = vmatmul.mubr.bf16.gmra.mrb[0].mxu0 %v672
        %v808 = vpop.f32.mrb[0].mxu0
        %v809 = vadd.f32 %v629, %v808
        %v810 = vpop.f32.mrb[0].mxu0
        %v811 = vpop.f32.mrb[0].mxu0
        %v812 = vadd.f32 %v629, %v811
        %v813 = vpop.f32.mrb[0].mxu0
        %814 = vmatprep.mubr.bf16.mxu0 0
        %815 = vmatmul.mubr.bf16.gmra.mrb[0].mxu0 %v675
        %v816 = vpop.f32.mrb[0].mxu0
        %v817 = vadd.f32 %v629, %v816
        %v818 = vpop.f32.mrb[0].mxu0
        %v819 = vpop.f32.mrb[0].mxu0
        %v820 = vadd.f32 %v629, %v819
        %v821 = vpop.f32.mrb[0].mxu0
        %822 = vmatprep.mubr.bf16.mxu0 0
        %823 = vmatmul.mubr.bf16.gmra.mrb[0].mxu0 %v678
        %v824 = vpop.f32.mrb[0].mxu0
        %v825 = vadd.f32 %v629, %v824
        %v826 = vpop.f32.mrb[0].mxu0
        %v827 = vpop.f32.mrb[0].mxu0
        %v828 = vadd.f32 %v629, %v827
        %v829 = vpop.f32.mrb[0].mxu0
        %830 = vmatprep.mubr.bf16.mxu0 0
        %831 = vmatmul.mubr.bf16.gmra.mrb[0].mxu0 %v681
        %v832 = vpop.f32.mrb[0].mxu0
        %v833 = vadd.f32 %v629, %v832
        %v834 = vpop.f32.mrb[0].mxu0
        %v835 = vpop.f32.mrb[0].mxu0
        %v836 = vadd.f32 %v629, %v835
        %v837 = vpop.f32.mrb[0].mxu0
        %838 = vmatprep.mubr.bf16.mxu0 0
        %839 = vmatmul.mubr.bf16.gmra.mrb[0].mxu0 %v684
        %v840 = vpop.f32.mrb[0].mxu0
        %v841 = vadd.f32 %v629, %v840
        %v842 = vpop.f32.mrb[0].mxu0
        %v843 = vpop.f32.mrb[0].mxu0
        %v844 = vadd.f32 %v629, %v843
        %v845 = vpop.f32.mrb[0].mxu0
        %846 = vdwg.mxu0
        %v847 = vmax.f32 %v721, 0.0
        %v848 = vmax.f32 %v724, 0.0
        %v849 = vmax.f32 %v729, 0.0
        %v850 = vmax.f32 %v732, 0.0
        %v851 = vmax.f32 %v737, 0.0
        %v852 = vmax.f32 %v740, 0.0
        %v853 = vmax.f32 %v745, 0.0
        %v854 = vmax.f32 %v748, 0.0
        %v855 = vmax.f32 %v753, 0.0
        %v856 = vmax.f32 %v756, 0.0
        %v857 = vmax.f32 %v761, 0.0
        %v858 = vmax.f32 %v764, 0.0
        %v859 = vmax.f32 %v769, 0.0
        %v860 = vmax.f32 %v772, 0.0
        %v861 = vmax.f32 %v777, 0.0
        %v862 = vmax.f32 %v780, 0.0
        %v863 = vmax.f32 %v785, 0.0
        %v864 = vmax.f32 %v788, 0.0
        %v865 = vmax.f32 %v793, 0.0
        %v866 = vmax.f32 %v796, 0.0
        %v867 = vmax.f32 %v801, 0.0
        %v868 = vmax.f32 %v804, 0.0
        %v869 = vmax.f32 %v809, 0.0
        %v870 = vmax.f32 %v812, 0.0
        %v871 = vmax.f32 %v817, 0.0
        %v872 = vmax.f32 %v820, 0.0
        %v873 = vmax.f32 %v825, 0.0
        %v874 = vmax.f32 %v828, 0.0
        %v875 = vmax.f32 %v833, 0.0
        %v876 = vmax.f32 %v836, 0.0
        %v877 = vmax.f32 %v841, 0.0
        %v878 = vmax.f32 %v844, 0.0
        %v879 = vpack.c.bf16 %v848, %v847
        %v880 = vpack.c.bf16 %v850, %v849
        %v881 = vpack.c.bf16 %v852, %v851
        %v882 = vpack.c.bf16 %v854, %v853
        %v883 = vpack.c.bf16 %v856, %v855
        %v884 = vpack.c.bf16 %v858, %v857
        %v885 = vpack.c.bf16 %v860, %v859
        %v886 = vpack.c.bf16 %v862, %v861
        %v887 = vpack.c.bf16 %v864, %v863
        %v888 = vpack.c.bf16 %v866, %v865
        %v889 = vpack.c.bf16 %v868, %v867
        %v890 = vpack.c.bf16 %v870, %v869
        %v891 = vpack.c.bf16 %v872, %v871
        %v892 = vpack.c.bf16 %v874, %v873
        %v893 = vpack.c.bf16 %v876, %v875
        %v894 = vpack.c.bf16 %v878, %v877
        %v895 = vld [vmem:[%s5] sm:$0xf]
        %v896 = vld [vmem:[%s5 + $0x4] sm:$0xf]
        %v897 = vld [vmem:[%s6] sm:$0x1]
        %v899 = vlaneseq
        %v900 = vshrl.u32 %v899, 7
        %v901 = vsub.s32 0, %v900
        %v902 = vrot.slane %v897, %v901
        %v906 = vunpack.c.l.b16 %v895
        %v907 = vunpack.c.l.b16 %v896
        %v908 = vpack.c.b16 %v907, %v906
        %v911 = vsel %vm637, %v879, 0
        %v914 = vsel %vm637, %v880, 0
        %v917 = vsel %vm637, %v881, 0
        %v920 = vsel %vm637, %v882, 0
        %v923 = vsel %vm637, %v883, 0
        %v926 = vsel %vm637, %v884, 0
        %v929 = vsel %vm637, %v885, 0
        %v932 = vsel %vm637, %v886, 0
        %v935 = vsel %vm637, %v887, 0
        %v938 = vsel %vm637, %v888, 0
        %v941 = vsel %vm637, %v889, 0
        %v944 = vsel %vm637, %v890, 0
        %v947 = vsel %vm637, %v891, 0
        %v950 = vsel %vm637, %v892, 0
        %v953 = vsel %vm637, %v893, 0
        %v956 = vsel %vm637, %v894, 0
        %958 = vmatprep.subr.bf16.mxu0 0
        %959 = vmatpush1.bf16.msra.mxu0 %v908
        %960 = vmatprep.subr.bf16.mxu0 0
        %961 = vmatpush1.bf16.msra.mxu0 0
        %962 = vmatprep.subr.bf16.mxu0 0
        %963 = vmatpush1.bf16.msra.mxu0 0
        %964 = vmatprep.subr.bf16.mxu0 0
        %965 = vmatpush1.bf16.msra.mxu0 0
        %966 = vmatprep.subr.bf16.mxu0 0
        %967 = vmatpush1.bf16.msra.mxu0 0
        %968 = vmatprep.subr.bf16.mxu0 0
        %969 = vmatpush1.bf16.msra.mxu0 0
        %970 = vmatprep.subr.bf16.mxu0 0
        %971 = vmatpush1.bf16.msra.mxu0 0
        %972 = vmatprep.subr.bf16.mxu0 0
        %973 = vmatpush1.bf16.msra.mxu0 0
        %974 = vmatprep.subr.bf16.mxu0 0
        %975 = vmatpush1.bf16.msra.mxu0 0
        %976 = vmatprep.subr.bf16.mxu0 0
        %977 = vmatpush1.bf16.msra.mxu0 0
        %978 = vmatprep.subr.bf16.mxu0 0
        %979 = vmatpush1.bf16.msra.mxu0 0
        %980 = vmatprep.subr.bf16.mxu0 0
        %981 = vmatpush1.bf16.msra.mxu0 0
        %982 = vmatprep.subr.bf16.mxu0 0
        %983 = vmatpush1.bf16.msra.mxu0 0
        %984 = vmatprep.subr.bf16.mxu0 0
        %985 = vmatpush1.bf16.msra.mxu0 0
        %986 = vmatprep.subr.bf16.mxu0 0
        %987 = vmatpush1.bf16.msra.mxu0 0
        %988 = vmatprep.subr.bf16.mxu0 0
        %989 = vmatpush1.bf16.msra.mxu0 0
        %990 = vmatprep.mubr.bf16.mxu0 0
        %991 = vmatmul.mubr.bf16.gmra.mrb[0].mxu0 %v911
        %v992 = vpop.f32.mrb[0].mxu0
        %v993 = vadd.f32 %v902, %v992
        %v994 = vpop.f32.mrb[0].mxu0
        %v995 = vpop.f32.mrb[0].mxu0
        %v996 = vadd.f32 %v902, %v995
        %v997 = vpop.f32.mrb[0].mxu0
        %998 = vmatprep.mubr.bf16.mxu0 0
        %999 = vmatmul.mubr.bf16.gmra.mrb[0].mxu0 %v914
        %v1000 = vpop.f32.mrb[0].mxu0
        %v1001 = vadd.f32 %v902, %v1000
        %v1002 = vpop.f32.mrb[0].mxu0
        %v1003 = vpop.f32.mrb[0].mxu0
        %v1004 = vadd.f32 %v902, %v1003
        %v1005 = vpop.f32.mrb[0].mxu0
        %1006 = vmatprep.mubr.bf16.mxu0 0
        %1007 = vmatmul.mubr.bf16.gmra.mrb[0].mxu0 %v917
        %v1008 = vpop.f32.mrb[0].mxu0
        %v1009 = vadd.f32 %v902, %v1008
        %v1010 = vpop.f32.mrb[0].mxu0
        %v1011 = vpop.f32.mrb[0].mxu0
        %v1012 = vadd.f32 %v902, %v1011
        %v1013 = vpop.f32.mrb[0].mxu0
        %1014 = vmatprep.mubr.bf16.mxu0 0
        %1015 = vmatmul.mubr.bf16.gmra.mrb[0].mxu0 %v920
        %v1016 = vpop.f32.mrb[0].mxu0
        %v1017 = vadd.f32 %v902, %v1016
        %v1018 = vpop.f32.mrb[0].mxu0
        %v1019 = vpop.f32.mrb[0].mxu0
        %v1020 = vadd.f32 %v902, %v1019
        %v1021 = vpop.f32.mrb[0].mxu0
        %1022 = vmatprep.mubr.bf16.mxu0 0
        %1023 = vmatmul.mubr.bf16.gmra.mrb[0].mxu0 %v923
        %v1024 = vpop.f32.mrb[0].mxu0
        %v1025 = vadd.f32 %v902, %v1024
        %v1026 = vpop.f32.mrb[0].mxu0
        %v1027 = vpop.f32.mrb[0].mxu0
        %v1028 = vadd.f32 %v902, %v1027
        %v1029 = vpop.f32.mrb[0].mxu0
        %1030 = vmatprep.mubr.bf16.mxu0 0
        %1031 = vmatmul.mubr.bf16.gmra.mrb[0].mxu0 %v926
        %v1032 = vpop.f32.mrb[0].mxu0
        %v1033 = vadd.f32 %v902, %v1032
        %v1034 = vpop.f32.mrb[0].mxu0
        %v1035 = vpop.f32.mrb[0].mxu0
        %v1036 = vadd.f32 %v902, %v1035
        %v1037 = vpop.f32.mrb[0].mxu0
        %1038 = vmatprep.mubr.bf16.mxu0 0
        %1039 = vmatmul.mubr.bf16.gmra.mrb[0].mxu0 %v929
        %v1040 = vpop.f32.mrb[0].mxu0
        %v1041 = vadd.f32 %v902, %v1040
        %v1042 = vpop.f32.mrb[0].mxu0
        %v1043 = vpop.f32.mrb[0].mxu0
        %v1044 = vadd.f32 %v902, %v1043
        %v1045 = vpop.f32.mrb[0].mxu0
        %1046 = vmatprep.mubr.bf16.mxu0 0
        %1047 = vmatmul.mubr.bf16.gmra.mrb[0].mxu0 %v932
        %v1048 = vpop.f32.mrb[0].mxu0
        %v1049 = vadd.f32 %v902, %v1048
        %v1050 = vpop.f32.mrb[0].mxu0
        %v1051 = vpop.f32.mrb[0].mxu0
        %v1052 = vadd.f32 %v902, %v1051
        %v1053 = vpop.f32.mrb[0].mxu0
        %1054 = vmatprep.mubr.bf16.mxu0 0
        %1055 = vmatmul.mubr.bf16.gmra.mrb[0].mxu0 %v935
        %v1056 = vpop.f32.mrb[0].mxu0
        %v1057 = vadd.f32 %v902, %v1056
        %v1058 = vpop.f32.mrb[0].mxu0
        %v1059 = vpop.f32.mrb[0].mxu0
        %v1060 = vadd.f32 %v902, %v1059
        %v1061 = vpop.f32.mrb[0].mxu0
        %1062 = vmatprep.mubr.bf16.mxu0 0
        %1063 = vmatmul.mubr.bf16.gmra.mrb[0].mxu0 %v938
        %v1064 = vpop.f32.mrb[0].mxu0
        %v1065 = vadd.f32 %v902, %v1064
        %v1066 = vpop.f32.mrb[0].mxu0
        %v1067 = vpop.f32.mrb[0].mxu0
        %v1068 = vadd.f32 %v902, %v1067
        %v1069 = vpop.f32.mrb[0].mxu0
        %1070 = vmatprep.mubr.bf16.mxu0 0
        %1071 = vmatmul.mubr.bf16.gmra.mrb[0].mxu0 %v941
        %v1072 = vpop.f32.mrb[0].mxu0
        %v1073 = vadd.f32 %v902, %v1072
        %v1074 = vpop.f32.mrb[0].mxu0
        %v1075 = vpop.f32.mrb[0].mxu0
        %v1076 = vadd.f32 %v902, %v1075
        %v1077 = vpop.f32.mrb[0].mxu0
        %1078 = vmatprep.mubr.bf16.mxu0 0
        %1079 = vmatmul.mubr.bf16.gmra.mrb[0].mxu0 %v944
        %v1080 = vpop.f32.mrb[0].mxu0
        %v1081 = vadd.f32 %v902, %v1080
        %v1082 = vpop.f32.mrb[0].mxu0
        %v1083 = vpop.f32.mrb[0].mxu0
        %v1084 = vadd.f32 %v902, %v1083
        %v1085 = vpop.f32.mrb[0].mxu0
        %1086 = vmatprep.mubr.bf16.mxu0 0
        %1087 = vmatmul.mubr.bf16.gmra.mrb[0].mxu0 %v947
        %v1088 = vpop.f32.mrb[0].mxu0
        %v1089 = vadd.f32 %v902, %v1088
        %v1090 = vpop.f32.mrb[0].mxu0
        %v1091 = vpop.f32.mrb[0].mxu0
        %v1092 = vadd.f32 %v902, %v1091
        %v1093 = vpop.f32.mrb[0].mxu0
        %1094 = vmatprep.mubr.bf16.mxu0 0
        %1095 = vmatmul.mubr.bf16.gmra.mrb[0].mxu0 %v950
        %v1096 = vpop.f32.mrb[0].mxu0
        %v1097 = vadd.f32 %v902, %v1096
        %v1098 = vpop.f32.mrb[0].mxu0
        %v1099 = vpop.f32.mrb[0].mxu0
        %v1100 = vadd.f32 %v902, %v1099
        %v1101 = vpop.f32.mrb[0].mxu0
        %1102 = vmatprep.mubr.bf16.mxu0 0
        %1103 = vmatmul.mubr.bf16.gmra.mrb[0].mxu0 %v953
        %v1104 = vpop.f32.mrb[0].mxu0
        %v1105 = vadd.f32 %v902, %v1104
        %v1106 = vpop.f32.mrb[0].mxu0
        %v1107 = vpop.f32.mrb[0].mxu0
        %v1108 = vadd.f32 %v902, %v1107
        %v1109 = vpop.f32.mrb[0].mxu0
        %1110 = vmatprep.mubr.bf16.mxu0 0
        %1111 = vmatmul.mubr.bf16.gmra.mrb[0].mxu0 %v956
        %v1112 = vpop.f32.mrb[0].mxu0
        %v1113 = vadd.f32 %v902, %v1112
        %v1114 = vpop.f32.mrb[0].mxu0
        %v1115 = vpop.f32.mrb[0].mxu0
        %v1116 = vadd.f32 %v902, %v1115
        %v1117 = vpop.f32.mrb[0].mxu0
        %1118 = vdwg.mxu0
        %1119 = vst.msk [vmem:[%s280] sm:$0xff] %vm357, %v993
        %1120 = vst.msk [vmem:[%s280 + $0x8] sm:$0xff] %vm357, %v996
        %1121 = vst.msk [vmem:[%s280 + $0x10] sm:$0xff] %vm357, %v1001
        %1122 = vst.msk [vmem:[%s280 + $0x18] sm:$0xff] %vm357, %v1004
        %1123 = vst.msk [vmem:[%s280 + $0x20] sm:$0xff] %vm357, %v1009
        %1124 = vst.msk [vmem:[%s280 + $0x28] sm:$0xff] %vm357, %v1012
        %1125 = vst.msk [vmem:[%s280 + $0x30] sm:$0xff] %vm357, %v1017
        %1126 = vst.msk [vmem:[%s280 + $0x38] sm:$0xff] %vm357, %v1020
        %1127 = vst.msk [vmem:[%s280 + $0x40] sm:$0xff] %vm357, %v1025
        %1128 = vst.msk [vmem:[%s280 + $0x48] sm:$0xff] %vm357, %v1028
        %1129 = vst.msk [vmem:[%s280 + $0x50] sm:$0xff] %vm357, %v1033
        %1130 = vst.msk [vmem:[%s280 + $0x58] sm:$0xff] %vm357, %v1036
        %1131 = vst.msk [vmem:[%s280 + $0x60] sm:$0xff] %vm357, %v1041
        %1132 = vst.msk [vmem:[%s280 + $0x68] sm:$0xff] %vm357, %v1044
        %1133 = vst.msk [vmem:[%s280 + $0x70] sm:$0xff] %vm357, %v1049
        %1134 = vst.msk [vmem:[%s280 + $0x78] sm:$0xff] %vm357, %v1052
        %1135 = vst.msk [vmem:[%s280 + $0x80] sm:$0xff] %vm357, %v1057
        %1136 = vst.msk [vmem:[%s280 + $0x88] sm:$0xff] %vm357, %v1060
        %1137 = vst.msk [vmem:[%s280 + $0x90] sm:$0xff] %vm357, %v1065
        %1138 = vst.msk [vmem:[%s280 + $0x98] sm:$0xff] %vm357, %v1068
        %1139 = vst.msk [vmem:[%s280 + $0xa0] sm:$0xff] %vm357, %v1073
        %1140 = vst.msk [vmem:[%s280 + $0xa8] sm:$0xff] %vm357, %v1076
        %1141 = vst.msk [vmem:[%s280 + $0xb0] sm:$0xff] %vm357, %v1081
        %1142 = vst.msk [vmem:[%s280 + $0xb8] sm:$0xff] %vm357, %v1084
        %1143 = vst.msk [vmem:[%s280 + $0xc0] sm:$0xff] %vm357, %v1089
        %1144 = vst.msk [vmem:[%s280 + $0xc8] sm:$0xff] %vm357, %v1092
        %1145 = vst.msk [vmem:[%s280 + $0xd0] sm:$0xff] %vm357, %v1097
        %1146 = vst.msk [vmem:[%s280 + $0xd8] sm:$0xff] %vm357, %v1100
        %1147 = vst.msk [vmem:[%s280 + $0xe0] sm:$0xff] %vm357, %v1105
        %1148 = vst.msk [vmem:[%s280 + $0xe8] sm:$0xff] %vm357, %v1108
        %1149 = vst.msk [vmem:[%s280 + $0xf0] sm:$0xff] %vm357, %v1113
        %1150 = vst.msk [vmem:[%s280 + $0xf8] sm:$0xff] %vm357, %v1116
        %s1151 = sand.u32 %s178, 1
        %s1152 = sand.u32 %s178, 1
        %s1153 = smul.addr %s1152, 256
        %s1154 = scalar_lea.vmem [#allocation2], %s1153
        // Predicated region
        $region49: #{tpu_custom_call.1} parent=47 // pred_check
          %p1155 = pneg %p188
        $region50: #{tpu_custom_call.1} parent=47 // pred_check_branch
          %1157 = sbr.rel (%p1155) target = $region52
        $region51: #{tpu_custom_call.1} parent=47 // pred_region
          %s1158 = smul.u32 32, %s18
          %s1159 = ssub.s32 38, %s1158
          %p1160 = scmp.lt.s32.totalorder %s1159, 32
          %s1161 = scalar_select %p1160, %s1159, 32
          %s1162 = smul.u32 128, %s1161
          %p1163 = scmp.ne.s32.totalorder 0, %s1162
          %s1164 = smul.addr %s1158, 8
          %s1165 = scalar_lea.vmem %s7, %s1164
          // Predicated region
          $region53: #{tpu_custom_call.1} parent=51 // pred_check
            %p1166 = pneg %p1163
          $region54: #{tpu_custom_call.1} parent=51 // pred_check_branch
            %1168 = sbr.rel (%p1166) target = $region56
          $region55: #{tpu_custom_call.1} parent=51 // pred_region
            // Predicated region
            $region57: #{tpu_custom_call.1} parent=55 // pred_check
              _
            $region58: #{tpu_custom_call.1} parent=55 // pred_check_branch
              %1170 = sbr.rel (0) target = $region60
            $region59: #{tpu_custom_call.1} parent=55 // pred_region
              // Predicated region
              $region79: #{tpu_custom_call.1} parent=59 // pred_check
                _
              $region80: #{tpu_custom_call.1} parent=59 // pred_check_branch
                %1281 = sbr.rel (0) target = $region82
              $region81: #{tpu_custom_call.1} parent=59 // pred_region
                %s1282 = sshrl.u32 %s1161, 5
                // While loop
                $region83: #{tpu_custom_call.1} parent=81 // loop_pre_header
                  _
                $region84: #{tpu_custom_call.1} parent=81 // loop_header
                  %s1284 = sphi 0, %s1286
                  %p1285 = scmp.ge.s32.totalorder %s1284, %s1282
                  %s1289 = sphi 0, %s1358
                  %s1290 = sphi %s1154, %s1361
                  %s1291 = sphi %s1165, %s1362
                $region85: #{tpu_custom_call.1} parent=81 // loop_header_branch
                  %1288 = sbr.rel (%p1285) target = $region89
                $region86: #{tpu_custom_call.1} parent=81 // loop_body
                  %v1292 = vld [vmem:[%s1290] sm:$0xff]
                  %1293 = vst [vmem:[%s1291] sm:$0xff] %v1292
                  %v1294 = vld [vmem:[%s1290 + $0x8] sm:$0xff]
                  %1295 = vst [vmem:[%s1291 + $0x8] sm:$0xff] %v1294
                  %v1296 = vld [vmem:[%s1290 + $0x10] sm:$0xff]
                  %1297 = vst [vmem:[%s1291 + $0x10] sm:$0xff] %v1296
                  %v1298 = vld [vmem:[%s1290 + $0x18] sm:$0xff]
                  %1299 = vst [vmem:[%s1291 + $0x18] sm:$0xff] %v1298
                  %v1300 = vld [vmem:[%s1290 + $0x20] sm:$0xff]
                  %1301 = vst [vmem:[%s1291 + $0x20] sm:$0xff] %v1300
                  %v1302 = vld [vmem:[%s1290 + $0x28] sm:$0xff]
                  %1303 = vst [vmem:[%s1291 + $0x28] sm:$0xff] %v1302
                  %v1304 = vld [vmem:[%s1290 + $0x30] sm:$0xff]
                  %1305 = vst [vmem:[%s1291 + $0x30] sm:$0xff] %v1304
                  %v1306 = vld [vmem:[%s1290 + $0x38] sm:$0xff]
                  %1307 = vst [vmem:[%s1291 + $0x38] sm:$0xff] %v1306
                  %v1308 = vld [vmem:[%s1290 + $0x40] sm:$0xff]
                  %1309 = vst [vmem:[%s1291 + $0x40] sm:$0xff] %v1308
                  %v1310 = vld [vmem:[%s1290 + $0x48] sm:$0xff]
                  %1311 = vst [vmem:[%s1291 + $0x48] sm:$0xff] %v1310
                  %v1312 = vld [vmem:[%s1290 + $0x50] sm:$0xff]
                  %1313 = vst [vmem:[%s1291 + $0x50] sm:$0xff] %v1312
                  %v1314 = vld [vmem:[%s1290 + $0x58] sm:$0xff]
                  %1315 = vst [vmem:[%s1291 + $0x58] sm:$0xff] %v1314
                  %v1316 = vld [vmem:[%s1290 + $0x60] sm:$0xff]
                  %1317 = vst [vmem:[%s1291 + $0x60] sm:$0xff] %v1316
                  %v1318 = vld [vmem:[%s1290 + $0x68] sm:$0xff]
                  %1319 = vst [vmem:[%s1291 + $0x68] sm:$0xff] %v1318
                  %v1320 = vld [vmem:[%s1290 + $0x70] sm:$0xff]
                  %1321 = vst [vmem:[%s1291 + $0x70] sm:$0xff] %v1320
                  %v1322 = vld [vmem:[%s1290 + $0x78] sm:$0xff]
                  %1323 = vst [vmem:[%s1291 + $0x78] sm:$0xff] %v1322
                  %v1324 = vld [vmem:[%s1290 + $0x80] sm:$0xff]
                  %1325 = vst [vmem:[%s1291 + $0x80] sm:$0xff] %v1324
                  %v1326 = vld [vmem:[%s1290 + $0x88] sm:$0xff]
                  %1327 = vst [vmem:[%s1291 + $0x88] sm:$0xff] %v1326
                  %v1328 = vld [vmem:[%s1290 + $0x90] sm:$0xff]
                  %1329 = vst [vmem:[%s1291 + $0x90] sm:$0xff] %v1328
                  %v1330 = vld [vmem:[%s1290 + $0x98] sm:$0xff]
                  %1331 = vst [vmem:[%s1291 + $0x98] sm:$0xff] %v1330
                  %v1332 = vld [vmem:[%s1290 + $0xa0] sm:$0xff]
                  %1333 = vst [vmem:[%s1291 + $0xa0] sm:$0xff] %v1332
                  %v1334 = vld [vmem:[%s1290 + $0xa8] sm:$0xff]
                  %1335 = vst [vmem:[%s1291 + $0xa8] sm:$0xff] %v1334
                  %v1336 = vld [vmem:[%s1290 + $0xb0] sm:$0xff]
                  %1337 = vst [vmem:[%s1291 + $0xb0] sm:$0xff] %v1336
                  %v1338 = vld [vmem:[%s1290 + $0xb8] sm:$0xff]
                  %1339 = vst [vmem:[%s1291 + $0xb8] sm:$0xff] %v1338
                  %v1340 = vld [vmem:[%s1290 + $0xc0] sm:$0xff]
                  %1341 = vst [vmem:[%s1291 + $0xc0] sm:$0xff] %v1340
                  %v1342 = vld [vmem:[%s1290 + $0xc8] sm:$0xff]
                  %1343 = vst [vmem:[%s1291 + $0xc8] sm:$0xff] %v1342
                  %v1344 = vld [vmem:[%s1290 + $0xd0] sm:$0xff]
                  %1345 = vst [vmem:[%s1291 + $0xd0] sm:$0xff] %v1344
                  %v1346 = vld [vmem:[%s1290 + $0xd8] sm:$0xff]
                  %1347 = vst [vmem:[%s1291 + $0xd8] sm:$0xff] %v1346
                  %v1348 = vld [vmem:[%s1290 + $0xe0] sm:$0xff]
                  %1349 = vst [vmem:[%s1291 + $0xe0] sm:$0xff] %v1348
                  %v1350 = vld [vmem:[%s1290 + $0xe8] sm:$0xff]
                  %1351 = vst [vmem:[%s1291 + $0xe8] sm:$0xff] %v1350
                  %v1352 = vld [vmem:[%s1290 + $0xf0] sm:$0xff]
                  %1353 = vst [vmem:[%s1291 + $0xf0] sm:$0xff] %v1352
                  %v1354 = vld [vmem:[%s1290 + $0xf8] sm:$0xff]
                  %1355 = vst [vmem:[%s1291 + $0xf8] sm:$0xff] %v1354
                  %s1356 = sadd.s32 1, %s1289
                  %p1357 = scmp.ge.s32.totalorder %s1356, %s1282
                  %s1358 = scalar_select %p1357, 0, %s1356
                  %s1359 = smul.u32 %s1358, 256
                  %s1360 = smul.u32 %s1358, 256
                  %s1361 = scalar_lea.vmem %s1154, %s1359 [#allocation2]
                  %s1362 = scalar_lea.vmem %s1165, %s1360
                $region87: #{tpu_custom_call.1} parent=81 // loop_footer
                  %s1286 = sadd.s32 %s1284, 1
                $region88: #{tpu_custom_call.1} parent=81 // loop_footer_branch
                  %1283 = sbr.rel target = $region84
                $region89: #{tpu_custom_call.1} parent=81 // loop_exit
                  _
                %s1363 = sshrl.u32 %s1161, 5
                %s1364 = sand.u32 %s1161, 31
                %s1365 = smul.u32 %s1363, 32
                %s1366 = smul.u32 8, %s1365
                %s1367 = scalar_lea.vmem %s1154, %s1366 [#allocation2]
                %s1368 = smul.u32 8, %s1365
                %s1369 = scalar_lea.vmem %s1165, %s1368
                // While loop
                $region90: #{tpu_custom_call.1} parent=81 // loop_pre_header
                  _
                $region91: #{tpu_custom_call.1} parent=81 // loop_header
                  %s1371 = sphi 0, %s1373
                  %p1372 = scmp.ge.s32.totalorder %s1371, %s1364
                  %s1376 = sphi 0, %s1383
                  %s1377 = sphi %s1367, %s1386
                  %s1378 = sphi %s1369, %s1387
                $region92: #{tpu_custom_call.1} parent=81 // loop_header_branch
                  %1375 = sbr.rel (%p1372) target = $region96
                $region93: #{tpu_custom_call.1} parent=81 // loop_body
                  %v1379 = vld [vmem:[%s1377] sm:$0xff]
                  %1380 = vst [vmem:[%s1378] sm:$0xff] %v1379
                  %s1381 = sadd.s32 1, %s1376
                  %p1382 = scmp.ge.s32.totalorder %s1381, %s1364
                  %s1383 = scalar_select %p1382, 0, %s1381
                  %s1384 = smul.u32 %s1383, 8
                  %s1385 = smul.u32 %s1383, 8
                  %s1386 = scalar_lea.vmem %s1367, %s1384 [#allocation2]
                  %s1387 = scalar_lea.vmem %s1369, %s1385
                $region94: #{tpu_custom_call.1} parent=81 // loop_footer
                  %s1373 = sadd.s32 %s1371, 1
                $region95: #{tpu_custom_call.1} parent=81 // loop_footer_branch
                  %1370 = sbr.rel target = $region91
                $region96: #{tpu_custom_call.1} parent=81 // loop_exit
                  _
              $region82: #{tpu_custom_call.1} parent=59 // pred_fallthru
                _
              // Predicated region
              $region97: #{tpu_custom_call.1} parent=59 // pred_check
                _
              $region98: #{tpu_custom_call.1} parent=59 // pred_check_branch
                %1389 = sbr.rel target = $region100
              $region99: #{tpu_custom_call.1} parent=59 // pred_region
                _
              $region100: #{tpu_custom_call.1} parent=59 // pred_fallthru
                _
            $region60: #{tpu_custom_call.1} parent=55 // pred_fallthru
              _
            // Predicated region
            $region61: #{tpu_custom_call.1} parent=55 // pred_check
              _
            $region62: #{tpu_custom_call.1} parent=55 // pred_check_branch
              %1172 = sbr.rel target = $region64
            $region63: #{tpu_custom_call.1} parent=55 // pred_region
              %s1174 = sshrl.u32 %s1161, 5
              // While loop
              $region65: #{tpu_custom_call.1} parent=63 // loop_pre_header
                _
              $region66: #{tpu_custom_call.1} parent=63 // loop_header
                %s1176 = sphi 0, %s1178
                %p1177 = scmp.ge.s32.totalorder %s1176, %s1174
                %s1181 = sphi 0, %s1250
                %s1182 = sphi %s1154, %s1253
                %s1183 = sphi %s1165, %s1254
              $region67: #{tpu_custom_call.1} parent=63 // loop_header_branch
                %1180 = sbr.rel (%p1177) target = $region71
              $region68: #{tpu_custom_call.1} parent=63 // loop_body
                %v1184 = vld [vmem:[%s1182] sm:$0xff]
                %1185 = vst [vmem:[%s1183] sm:$0xff] %v1184
                %v1186 = vld [vmem:[%s1182 + $0x8] sm:$0xff]
                %1187 = vst [vmem:[%s1183 + $0x8] sm:$0xff] %v1186
                %v1188 = vld [vmem:[%s1182 + $0x10] sm:$0xff]
                %1189 = vst [vmem:[%s1183 + $0x10] sm:$0xff] %v1188
                %v1190 = vld [vmem:[%s1182 + $0x18] sm:$0xff]
                %1191 = vst [vmem:[%s1183 + $0x18] sm:$0xff] %v1190
                %v1192 = vld [vmem:[%s1182 + $0x20] sm:$0xff]
                %1193 = vst [vmem:[%s1183 + $0x20] sm:$0xff] %v1192
                %v1194 = vld [vmem:[%s1182 + $0x28] sm:$0xff]
                %1195 = vst [vmem:[%s1183 + $0x28] sm:$0xff] %v1194
                %v1196 = vld [vmem:[%s1182 + $0x30] sm:$0xff]
                %1197 = vst [vmem:[%s1183 + $0x30] sm:$0xff] %v1196
                %v1198 = vld [vmem:[%s1182 + $0x38] sm:$0xff]
                %1199 = vst [vmem:[%s1183 + $0x38] sm:$0xff] %v1198
                %v1200 = vld [vmem:[%s1182 + $0x40] sm:$0xff]
                %1201 = vst [vmem:[%s1183 + $0x40] sm:$0xff] %v1200
                %v1202 = vld [vmem:[%s1182 + $0x48] sm:$0xff]
                %1203 = vst [vmem:[%s1183 + $0x48] sm:$0xff] %v1202
                %v1204 = vld [vmem:[%s1182 + $0x50] sm:$0xff]
                %1205 = vst [vmem:[%s1183 + $0x50] sm:$0xff] %v1204
                %v1206 = vld [vmem:[%s1182 + $0x58] sm:$0xff]
                %1207 = vst [vmem:[%s1183 + $0x58] sm:$0xff] %v1206
                %v1208 = vld [vmem:[%s1182 + $0x60] sm:$0xff]
                %1209 = vst [vmem:[%s1183 + $0x60] sm:$0xff] %v1208
                %v1210 = vld [vmem:[%s1182 + $0x68] sm:$0xff]
                %1211 = vst [vmem:[%s1183 + $0x68] sm:$0xff] %v1210
                %v1212 = vld [vmem:[%s1182 + $0x70] sm:$0xff]
                %1213 = vst [vmem:[%s1183 + $0x70] sm:$0xff] %v1212
                %v1214 = vld [vmem:[%s1182 + $0x78] sm:$0xff]
                %1215 = vst [vmem:[%s1183 + $0x78] sm:$0xff] %v1214
                %v1216 = vld [vmem:[%s1182 + $0x80] sm:$0xff]
                %1217 = vst [vmem:[%s1183 + $0x80] sm:$0xff] %v1216
                %v1218 = vld [vmem:[%s1182 + $0x88] sm:$0xff]
                %1219 = vst [vmem:[%s1183 + $0x88] sm:$0xff] %v1218
                %v1220 = vld [vmem:[%s1182 + $0x90] sm:$0xff]
                %1221 = vst [vmem:[%s1183 + $0x90] sm:$0xff] %v1220
                %v1222 = vld [vmem:[%s1182 + $0x98] sm:$0xff]
                %1223 = vst [vmem:[%s1183 + $0x98] sm:$0xff] %v1222
                %v1224 = vld [vmem:[%s1182 + $0xa0] sm:$0xff]
                %1225 = vst [vmem:[%s1183 + $0xa0] sm:$0xff] %v1224
                %v1226 = vld [vmem:[%s1182 + $0xa8] sm:$0xff]
                %1227 = vst [vmem:[%s1183 + $0xa8] sm:$0xff] %v1226
                %v1228 = vld [vmem:[%s1182 + $0xb0] sm:$0xff]
                %1229 = vst [vmem:[%s1183 + $0xb0] sm:$0xff] %v1228
                %v1230 = vld [vmem:[%s1182 + $0xb8] sm:$0xff]
                %1231 = vst [vmem:[%s1183 + $0xb8] sm:$0xff] %v1230
                %v1232 = vld [vmem:[%s1182 + $0xc0] sm:$0xff]
                %1233 = vst [vmem:[%s1183 + $0xc0] sm:$0xff] %v1232
                %v1234 = vld [vmem:[%s1182 + $0xc8] sm:$0xff]
                %1235 = vst [vmem:[%s1183 + $0xc8] sm:$0xff] %v1234
                %v1236 = vld [vmem:[%s1182 + $0xd0] sm:$0xff]
                %1237 = vst [vmem:[%s1183 + $0xd0] sm:$0xff] %v1236
                %v1238 = vld [vmem:[%s1182 + $0xd8] sm:$0xff]
                %1239 = vst [vmem:[%s1183 + $0xd8] sm:$0xff] %v1238
                %v1240 = vld [vmem:[%s1182 + $0xe0] sm:$0xff]
                %1241 = vst [vmem:[%s1183 + $0xe0] sm:$0xff] %v1240
                %v1242 = vld [vmem:[%s1182 + $0xe8] sm:$0xff]
                %1243 = vst [vmem:[%s1183 + $0xe8] sm:$0xff] %v1242
                %v1244 = vld [vmem:[%s1182 + $0xf0] sm:$0xff]
                %1245 = vst [vmem:[%s1183 + $0xf0] sm:$0xff] %v1244
                %v1246 = vld [vmem:[%s1182 + $0xf8] sm:$0xff]
                %1247 = vst [vmem:[%s1183 + $0xf8] sm:$0xff] %v1246
                %s1248 = sadd.s32 1, %s1181
                %p1249 = scmp.ge.s32.totalorder %s1248, %s1174
                %s1250 = scalar_select %p1249, 0, %s1248
                %s1251 = smul.u32 %s1250, 256
                %s1252 = smul.u32 %s1250, 256
                %s1253 = scalar_lea.vmem %s1154, %s1251 [#allocation2]
                %s1254 = scalar_lea.vmem %s1165, %s1252
              $region69: #{tpu_custom_call.1} parent=63 // loop_footer
                %s1178 = sadd.s32 %s1176, 1
              $region70: #{tpu_custom_call.1} parent=63 // loop_footer_branch
                %1175 = sbr.rel target = $region66
              $region71: #{tpu_custom_call.1} parent=63 // loop_exit
                _
              %s1255 = sshrl.u32 %s1161, 5
              %s1256 = sand.u32 %s1161, 31
              %s1257 = smul.u32 %s1255, 32
              %s1258 = smul.u32 8, %s1257
              %s1259 = scalar_lea.vmem %s1154, %s1258 [#allocation2]
              %s1260 = smul.u32 8, %s1257
              %s1261 = scalar_lea.vmem %s1165, %s1260
              // While loop
              $region72: #{tpu_custom_call.1} parent=63 // loop_pre_header
                _
              $region73: #{tpu_custom_call.1} parent=63 // loop_header
                %s1263 = sphi 0, %s1265
                %p1264 = scmp.ge.s32.totalorder %s1263, %s1256
                %s1268 = sphi 0, %s1275
                %s1269 = sphi %s1259, %s1278
                %s1270 = sphi %s1261, %s1279
              $region74: #{tpu_custom_call.1} parent=63 // loop_header_branch
                %1267 = sbr.rel (%p1264) target = $region78
              $region75: #{tpu_custom_call.1} parent=63 // loop_body
                %v1271 = vld [vmem:[%s1269] sm:$0xff]
                %1272 = vst [vmem:[%s1270] sm:$0xff] %v1271
                %s1273 = sadd.s32 1, %s1268
                %p1274 = scmp.ge.s32.totalorder %s1273, %s1256
                %s1275 = scalar_select %p1274, 0, %s1273
                %s1276 = smul.u32 %s1275, 8
                %s1277 = smul.u32 %s1275, 8
                %s1278 = scalar_lea.vmem %s1259, %s1276 [#allocation2]
                %s1279 = scalar_lea.vmem %s1261, %s1277
              $region76: #{tpu_custom_call.1} parent=63 // loop_footer
                %s1265 = sadd.s32 %s1263, 1
              $region77: #{tpu_custom_call.1} parent=63 // loop_footer_branch
                %1262 = sbr.rel target = $region73
              $region78: #{tpu_custom_call.1} parent=63 // loop_exit
                _
            $region64: #{tpu_custom_call.1} parent=55 // pred_fallthru
              _
          $region56: #{tpu_custom_call.1} parent=51 // pred_fallthru
            _
          %1390 = vnop
        $region52: #{tpu_custom_call.1} parent=47 // pred_fallthru
          _
      $region48: #{tpu_custom_call.1} parent=5 // pred_fallthru
        _
      %p1391 = scmp.le.s32.totalorder 2, %s13
      // Predicated region
      $region101: #{tpu_custom_call.1} parent=5 // pred_check
        %p1392 = pneg %p1391
      $region102: #{tpu_custom_call.1} parent=5 // pred_check_branch
        %1394 = sbr.rel (%p1392) target = $region104
      $region103: #{tpu_custom_call.1} parent=5 // pred_region
        %s1395 = ssub.s32 %s13, 2
        // Predicated region
        $region105: #{tpu_custom_call.1} parent=103 // pred_check
          %p1396 = pneg %p194
        $region106: #{tpu_custom_call.1} parent=103 // pred_check_branch
          %1398 = sbr.rel (%p1396) target = $region108
        $region107: #{tpu_custom_call.1} parent=103 // pred_region
          %s1399 = sand.u32 %s179, 1
          %s1400 = sand.u32 %s179, 1
          %s1401 = smul.addr %s1400, 256
          %s1402 = scalar_lea.vmem [#allocation2], %s1401
        $region108: #{tpu_custom_call.1} parent=103 // pred_fallthru
          _
      $region104: #{tpu_custom_call.1} parent=5 // pred_fallthru
        _
    $region6: #{tpu_custom_call.1} parent=1 // loop_footer
      %s17 = sadd.s32 1, %s13
    $region7: #{tpu_custom_call.1} parent=1 // loop_footer_branch
      %12 = sbr.rel target = $region3
    $region8: #{tpu_custom_call.1} parent=1 // loop_exit
      _

</llo_original>
